<compile_context>
chip_gen: v6e
topology: v6e:2x2x1
jax: 0.10.0
libtpu: 0.0.40
codegen_flags: <defaults>
</compile_context>

<pallas_src>
import functools

import numpy as np
import jax
import jax.numpy as jnp
from jax.experimental import pallas as pl
from jax.experimental.pallas import tpu as pltpu

LANE = 128


def _istft_kernel(x_ref, ba_ref, bb_ref, o_ref, *, n_fft, n_freq, n_frames, bc):
    # x_ref:  (BC, 2, T, F) f32    raw spectrogram, dim 1 = (real, imag)
    # ba_ref: (n_fft, 512)  bf16   frame-r   contribution (iDFT + OLA + 1/env + trim)
    # bb_ref: (n_fft, 512)  bf16   frame-r+1 contribution
    # o_ref:  (BC*T, 512)   f32    row (bc, r) = r-th hop-chunk of the trimmed signal
    x = x_ref[...]
    xr = x[:, 0]                                   # (BC, T, F)    real bins 0..F-1
    xi = x[:, 1, :, 1:n_freq - 1]                  # (BC, T, F-2)  imag bins 1..F-2
    # Fused spectral vector per frame: [Re 0..F-1 | Im 1..F-2] -> K = n_fft lanes.
    xf = jnp.concatenate([xr, xi], axis=-1)        # (BC, T, n_fft)
    lhs = xf.reshape(bc * n_frames, n_fft).astype(jnp.bfloat16)   # (BC*T, n_fft)

    pa = jnp.dot(lhs, ba_ref[...], preferred_element_type=jnp.float32)
    pb = jnp.dot(lhs, bb_ref[...], preferred_element_type=jnp.float32)

    # out[(bc, r)] = Xf[bc, r] @ BA + Xf[bc, r+1] @ BB : shift the BB partial
    # product up one row.  Row r = T-1 of each bc group becomes garbage (it
    # would need frame T, which does not exist) and is sliced off post-kernel.
    pb_shift = jnp.concatenate([pb[1:], pb[:1]], axis=0)
    o_ref[...] = pa + pb_shift


def _build_bases(n_fft: int, hop: int, n_cols: int):
    """BA, BB: (n_fft, n_cols) matrices folding irfft, overlap-add, 1/env and
    the centre trim.  Columns >= hop are zero (lane padding to n_cols).

    Trimmed-output chunk r (samples [half + r*hop, half + (r+1)*hop) of the
    full OLA signal, half = n_fft//2) only receives contributions from frames
    r and r+1 (guaranteed by half <= hop <= n_fft), so
        out[r, :hop] = Xf[r] @ BA[:, :hop] + Xf[r+1] @ BB[:, :hop]
    with Xf[t] = [Re X_t[0..F-1], Im X_t[1..F-2]].  The sin rows for the DC and
    Nyquist bins are identically zero, so their imaginary parts are -- exactly
    as in np.fft.irfft / torch.istft -- ignored.
    """
    N = n_fft
    F = N // 2 + 1
    half = N // 2
    assert N % 2 == 0
    assert half <= hop <= N, "basis folding assumes n_fft//2 <= hop <= n_fft"
    assert n_cols >= hop

    # Fused inverse-rDFT basis D: frame[n] = Xf @ D[:, n]   (D is (N, N)).
    k = np.arange(F, dtype=np.float64)
    n = np.arange(N, dtype=np.float64)
    ang = 2.0 * np.pi * np.outer(k, n) / N
    w = np.full((F, 1), 2.0)
    w[0, 0] = 1.0
    w[-1, 0] = 1.0
    d_cos = w * np.cos(ang) / N                 # (F, N)    -> Re bins 0..F-1
    d_sin = -2.0 * np.sin(ang[1:F - 1]) / N     # (F-2, N)  -> Im bins 1..F-2
    D = np.concatenate([d_cos, d_sin], axis=0)  # (N, N)

    # Overlap-add + envelope + centre trim as column selection / scaling of D.
    p = np.arange(hop)
    in_a = p < (N - half)        # frame r   covers trimmed position p
    in_b = p >= (hop - half)     # frame r+1 covers trimmed position p
    env = in_a.astype(np.float64) + in_b.astype(np.float64)
    assert env.min() > 0.0, "NOLA condition violated"
    scale = 1.0 / env            # == 0.5 only in the overlap window

    BA = np.zeros((N, n_cols))
    BB = np.zeros((N, n_cols))
    BA[:, p[in_a]] = D[:, half + p[in_a]] * scale[in_a]
    BB[:, p[in_b]] = D[:, half + p[in_b] - hop] * scale[in_b]
    return BA, BB


def inverse_spectrogram(x, n_fft: int, batch_size: int, hop_length: int = 490):
    """Pallas equivalent of InverseSpectrogram.forward.

    x: (B, 2*c1, F, T) float32 with F = n_fft//2 + 1 and channels interleaved
       as (real, imag) pairs: einops 'b (c1 c2) f t -> (b c1) f t c2', c2=2.
    Returns (B, c1, hop_length * (T - 1)) float32.
    """
    b, C, Fdim, T = x.shape
    assert b == batch_size
    assert C % 2 == 0 and T >= 2
    c1 = C // 2
    N = n_fft
    F = N // 2 + 1
    assert Fdim == F, f"freq dim {Fdim} must equal n_fft//2+1 = {F}"
    hop = hop_length
    BC = b * c1
    n_cols = ((hop + LANE - 1) // LANE) * LANE        # 490 -> 512 lane padding

    # Single remaining XLA glue op: split channels into (real, imag) pairs and
    # put the frequency axis last (lane dim).  ~65 KiB, one small fusion.
    # TODO(synk): the ragged (F, T) -> (T, F) transpose could also move into
    # the kernel once Mosaic minor-dim transposes of non-128-aligned shapes are
    # guaranteed; the win is microsecond-scale.
    xt = jnp.moveaxis(x.reshape(BC, 2, F, T), 3, 2)   # (BC, 2, T, F)

    ba_np, bb_np = _build_bases(N, hop, n_cols)
    ba = jnp.asarray(ba_np, jnp.bfloat16)             # (N, 512)
    bb = jnp.asarray(bb_np, jnp.bfloat16)             # (N, 512)

    kernel = functools.partial(
        _istft_kernel, n_fft=N, n_freq=F, n_frames=T, bc=BC)
    vmem = pl.BlockSpec(memory_space=pltpu.MemorySpace.VMEM)
    out = pl.pallas_call(
        kernel,
        out_shape=jax.ShapeDtypeStruct((BC * T, n_cols), jnp.float32),
        in_specs=[vmem, vmem, vmem],
        out_specs=vmem,
    )(xt, ba, bb)

    # Drop the lane padding (cols >= hop) and the invalid last frame-row of
    # each (b, c1) group BEFORE flattening time into the signal axis.
    out = out.reshape(BC, T, n_cols)[:, :T - 1, :hop]  # (BC, T-1, hop)
    return out.reshape(b, c1, hop * (T - 1))


def _reference_istft_numpy(x, n_fft: int, hop: int):
    """Pure numpy reference matching torch.istft semantics used by the module."""
    b, C, F, T = x.shape
    c1 = C // 2
    xc = (x[:, 0::2] + 1j * x[:, 1::2]).reshape(b * c1, F, T).astype(np.complex128)
    N = n_fft
    L_full = N + hop * (T - 1)
    y = np.zeros((b * c1, L_full))
    env = np.zeros((L_full,))
    for t in range(T):
        fr = np.fft.irfft(xc[:, :, t], n=N, axis=-1)
        y[:, t * hop:t * hop + N] += fr
        env[t * hop:t * hop + N] += 1.0
    y = y / env[None, :]
    half = N // 2
    return y[:, half:L_full - half].reshape(b, c1, -1)


if __name__ == "__main__":
    # Module parameters (synthetic, deterministic): n_fft=512, batch_size=2.
    n_fft = 512
    batch_size = 2
    hop = 490            # hardcoded in the PyTorch module
    c1 = 2               # -> 2*c1 = 4 input channels (real/imag interleaved)
    n_frames = 8
    n_freq = n_fft // 2 + 1  # 257

    key = jax.random.PRNGKey(0)
    x = jax.random.normal(key, (batch_size, 2 * c1, n_freq, n_frames), jnp.float32)

    fn = jax.jit(lambda xx: inverse_spectrogram(
        xx, n_fft=n_fft, batch_size=batch_size, hop_length=hop))
    y = jax.block_until_ready(fn(x))

    expected_shape = (batch_size, c1, hop * (n_frames - 1))
    assert y.shape == expected_shape, (y.shape, expected_shape)

    y_ref = _reference_istft_numpy(np.asarray(x), n_fft, hop)
    # bf16 operands (f32 MXU accumulation): ~2e-4 rms error vs ~0.06 signal rms.
    np.testing.assert_allclose(np.asarray(y), y_ref, rtol=2e-2, atol=3e-3)

    print("KERNEL_OK")
</pallas_src>

<mosaic_0001>
module attributes {stable_mosaic.version = 11 : i64} {
  func.func @_istft_kernel(%arg0: memref<4x2x8x257xf32, #tpu.memory_space<vmem>>, %arg1: memref<512x512xbf16, #tpu.memory_space<vmem>>, %arg2: memref<512x512xbf16, #tpu.memory_space<vmem>>, %arg3: memref<32x512xf32, #tpu.memory_space<vmem>>) attributes {dimension_semantics = [], scalar_prefetch = 0 : i64, scratch_operands = 0 : i64, tpu.core_type = #tpu.core_type<tc>} {
    %c0 = arith.constant 0 : index
    %c0_0 = arith.constant 0 : index
    %c0_1 = arith.constant 0 : index
    %c0_2 = arith.constant 0 : index
    %0 = vector.load %arg0[%c0, %c0_0, %c0_1, %c0_2] : memref<4x2x8x257xf32, #tpu.memory_space<vmem>>, vector<4x2x8x257xf32>
    %1 = vector.extract_strided_slice %0 {offsets = [0, 0, 0, 0], sizes = [4, 1, 8, 257], strides = [1, 1, 1, 1]} : vector<4x2x8x257xf32> to vector<4x1x8x257xf32>
    %2 = vector.shape_cast %1 : vector<4x1x8x257xf32> to vector<4x8x257xf32>
    %3 = vector.extract_strided_slice %0 {offsets = [0, 1, 0, 1], sizes = [4, 1, 8, 255], strides = [1, 1, 1, 1]} : vector<4x2x8x257xf32> to vector<4x1x8x255xf32>
    %4 = vector.shape_cast %3 : vector<4x1x8x255xf32> to vector<4x8x255xf32>
    %5 = tpu.concatenate %2, %4 in 2 : vector<4x8x257xf32>, vector<4x8x255xf32> -> vector<4x8x512xf32>
    %6 = vector.shape_cast %5 : vector<4x8x512xf32> to vector<32x512xf32>
    %7 = arith.truncf %6 : vector<32x512xf32> to vector<32x512xbf16>
    %c0_3 = arith.constant 0 : index
    %c0_4 = arith.constant 0 : index
    %8 = vector.load %arg1[%c0_3, %c0_4] : memref<512x512xbf16, #tpu.memory_space<vmem>>, vector<512x512xbf16>
    %cst = arith.constant dense<0.000000e+00> : vector<32x512xf32>
    %9 = tpu.matmul %7, %8, %cst {dimension_numbers = #tpu.dot_dimension_numbers<[1], [0], [0], [1], [0, 0, 1, 1], [], []>} : vector<32x512xbf16>, vector<512x512xbf16>, vector<32x512xf32> -> vector<32x512xf32>
    %c0_5 = arith.constant 0 : index
    %c0_6 = arith.constant 0 : index
    %10 = vector.load %arg2[%c0_5, %c0_6] : memref<512x512xbf16, #tpu.memory_space<vmem>>, vector<512x512xbf16>
    %cst_7 = arith.constant dense<0.000000e+00> : vector<32x512xf32>
    %11 = tpu.matmul %7, %10, %cst_7 {dimension_numbers = #tpu.dot_dimension_numbers<[1], [0], [0], [1], [0, 0, 1, 1], [], []>} : vector<32x512xbf16>, vector<512x512xbf16>, vector<32x512xf32> -> vector<32x512xf32>
    %12 = vector.extract_strided_slice %11 {offsets = [1, 0], sizes = [31, 512], strides = [1, 1]} : vector<32x512xf32> to vector<31x512xf32>
    %13 = vector.extract_strided_slice %11 {offsets = [0, 0], sizes = [1, 512], strides = [1, 1]} : vector<32x512xf32> to vector<1x512xf32>
    %14 = tpu.concatenate %12, %13 in 0 : vector<31x512xf32>, vector<1x512xf32> -> vector<32x512xf32>
    %15 = arith.addf %9, %14 : vector<32x512xf32>
    %c0_8 = arith.constant 0 : index
    %c0_9 = arith.constant 0 : index
    %16 = vector.load %arg3[%c0_8, %c0_9] : memref<32x512xf32, #tpu.memory_space<vmem>>, vector<32x512xf32>
    tpu.vector_store %arg3[%c0_8, %c0_9], %15 {strides = array<i32>} : memref<32x512xf32, #tpu.memory_space<vmem>>, vector<32x512xf32>,
    return
  }
}

</mosaic_0001>

<llo_original>
// kernel: _lambda_.1
$region0: #{_lambda_.1}
  #allocation0 [shape = 'u32[]', space=smem, size = 0x4, offset = 0x4, fixed_abs, tag = 'smem constant byte address 0x4 - core index']
  #allocation1 [shape = 'u32[144,128]{1,0:T(1,128)}', space=vmem, size = 0x12000, scoped, tag = 'internal scratch']
  %s0 = inlined_call_operand.hbm [shape: f32[4,2,8,257], index: 0, kind: input, shape index: {}]
  %s1 = inlined_call_operand.hbm [shape: bf16[512,512], index: 1, kind: input, shape index: {}]
  %s2 = inlined_call_operand.hbm [shape: bf16[512,512], index: 2, kind: input, shape index: {}]
  %s3 = inlined_call_operand.vmem [shape: f32[32,512], index: 3, kind: output, shape index: {}]
  %s4 = sld [smem:[#allocation0]]
  $region34: #{_lambda_.1} parent=0
    _
  %s6 = ssub.s32 1, %s4
  %s7 = scalar_select 0, %s6, %s4
  $region1: #{_lambda_.1} parent=0
    #allocation2 [shape = 'u8[98304]{0}', space=vmem, size = 0x18000, scoped, tag = 'input window, operand 0, single buffered']
    #allocation3 [shape = 's32[1]{0}', space=sflag, size = 0x4, scoped, tag = 'scoped memory for _lambda_.1']
    #allocation4 [shape = 'u8[524288]{0}', space=vmem, size = 0x80000, scoped, tag = 'input window, operand 1, single buffered']
    #allocation5 [shape = 's32[1]{0}', space=sflag, size = 0x4, scoped, tag = 'scoped memory for _lambda_.1']
    #allocation6 [shape = 'u8[524288]{0}', space=vmem, size = 0x80000, scoped, tag = 'input window, operand 2, single buffered']
    %8 = vsyncpa [#allocation3], 0
    %9 = vsyncpa [#allocation5], 0
    // Predicated region
    $region2: #{_lambda_.1} parent=1 // pred_check
      _
    $region3: #{_lambda_.1} parent=1 // pred_check_branch
      %11 = sbr.rel (0) target = $region5
    $region4: #{_lambda_.1} parent=1 // pred_region
      %s13 = ssub.s32 3072, 3072
      %14 = vsyncadd [#allocation3], %s13
      %s15 = sshll.u32 [#allocation2], 4
      %s16 = int_to_ptr.vmem [resolvable:$true] %s15
      %21 = dma.hbm_to_vmem [thread:$0]  %s0, 3072, %s16, [#allocation3], 384, 384, 24
    $region5: #{_lambda_.1} parent=1 // pred_fallthru
      _
    // Predicated region
    $region6: #{_lambda_.1} parent=1 // pred_check
      _
    $region7: #{_lambda_.1} parent=1 // pred_check_branch
      %23 = sbr.rel (0) target = $region9
    $region8: #{_lambda_.1} parent=1 // pred_region
      %s25 = ssub.s32 16384, 16384
      %26 = vsyncadd [#allocation5], %s25
      %s27 = sshll.u32 [#allocation4], 4
      %s28 = int_to_ptr.vmem [resolvable:$true] %s27
      %33 = dma.hbm_to_vmem [thread:$0]  %s1, 16384, %s28, [#allocation5], 256, 256, 16
    $region9: #{_lambda_.1} parent=1 // pred_fallthru
      _
    // Predicated region
    $region10: #{_lambda_.1} parent=1 // pred_check
      _
    $region11: #{_lambda_.1} parent=1 // pred_check_branch
      %35 = sbr.rel (0) target = $region13
    $region12: #{_lambda_.1} parent=1 // pred_region
      %s37 = ssub.s32 16384, 16384
      %38 = vsyncadd [#allocation5], %s37
      %s39 = sshll.u32 [#allocation6], 4
      %s40 = int_to_ptr.vmem [resolvable:$true] %s39
      %45 = dma.hbm_to_vmem [thread:$0]  %s2, 16384, %s40, [#allocation5], 256, 256, 16
    $region13: #{_lambda_.1} parent=1 // pred_fallthru
      _
    // Predicated region
    $region14: #{_lambda_.1} parent=1 // pred_check
      _
    $region15: #{_lambda_.1} parent=1 // pred_check_branch
      %47 = sbr.rel (0) target = $region17
    $region16: #{_lambda_.1} parent=1 // pred_region
      %48 = dma.done [#allocation3], 3072
    $region17: #{_lambda_.1} parent=1 // pred_fallthru
      _
    // Predicated region
    $region18: #{_lambda_.1} parent=1 // pred_check
      _
    $region19: #{_lambda_.1} parent=1 // pred_check_branch
      %50 = sbr.rel (0) target = $region21
    $region20: #{_lambda_.1} parent=1 // pred_region
      %51 = dma.done [#allocation5], 16384
    $region21: #{_lambda_.1} parent=1 // pred_fallthru
      _
    // Predicated region
    $region22: #{_lambda_.1} parent=1 // pred_check
      _
    $region23: #{_lambda_.1} parent=1 // pred_check_branch
      %53 = sbr.rel (0) target = $region25
    $region24: #{_lambda_.1} parent=1 // pred_region
      %54 = dma.done [#allocation5], 16384
    $region25: #{_lambda_.1} parent=1 // pred_fallthru
      _
    %v55 = vld [vmem:[#allocation2] sm:$0xff]
    %v56 = vld [vmem:[#allocation2 + $0x8] sm:$0xff]
    %v57 = vld [vmem:[#allocation2 + $0x10] sm:$0xff]
    %v58 = vld [vmem:[#allocation2 + $0x18] sm:$0xff]
    %v59 = vld [vmem:[#allocation2 + $0x20] sm:$0xff]
    %v60 = vld [vmem:[#allocation2 + $0x30] sm:$0xff]
    %v61 = vld [vmem:[#allocation2 + $0x38] sm:$0xff]
    %v62 = vld [vmem:[#allocation2 + $0x40] sm:$0xff]
    %v63 = vld [vmem:[#allocation2 + $0x48] sm:$0xff]
    %v64 = vld [vmem:[#allocation2 + $0x50] sm:$0xff]
    %v65 = vld [vmem:[#allocation2 + $0x60] sm:$0xff]
    %v66 = vld [vmem:[#allocation2 + $0x68] sm:$0xff]
    %v67 = vld [vmem:[#allocation2 + $0x70] sm:$0xff]
    %v68 = vld [vmem:[#allocation2 + $0x78] sm:$0xff]
    %v69 = vld [vmem:[#allocation2 + $0x80] sm:$0xff]
    %v70 = vld [vmem:[#allocation2 + $0x90] sm:$0xff]
    %v71 = vld [vmem:[#allocation2 + $0x98] sm:$0xff]
    %v72 = vld [vmem:[#allocation2 + $0xa0] sm:$0xff]
    %v73 = vld [vmem:[#allocation2 + $0xa8] sm:$0xff]
    %v74 = vld [vmem:[#allocation2 + $0xb0] sm:$0xff]
    %vm75 = vcmask 7168
    %v76 = vsel %vm75, %v57, %v58
    %v77 = vsel %vm75, %v62, %v63
    %v78 = vsel %vm75, %v67, %v68
    %v79 = vsel %vm75, %v72, %v73
    %v80 = vpack.c.bf16 %v60, %v55
    %v81 = vpack.c.bf16 %v61, %v56
    %v82 = vpack.c.bf16 %v77, %v76
    %v83 = vpack.c.bf16 %v64, %v59
    %v84 = vpack.c.bf16 %v70, %v65
    %v85 = vpack.c.bf16 %v71, %v66
    %v86 = vpack.c.bf16 %v79, %v78
    %v87 = vpack.c.bf16 %v74, %v69
    %v88 = vld [vmem:[#allocation4] sm:$0xff]
    %v89 = vld [vmem:[#allocation4 + $0x8] sm:$0xff]
    %v90 = vld [vmem:[#allocation4 + $0x10] sm:$0xff]
    %v91 = vld [vmem:[#allocation4 + $0x18] sm:$0xff]
    %v92 = vld [vmem:[#allocation4 + $0x20] sm:$0xff]
    %v93 = vld [vmem:[#allocation4 + $0x28] sm:$0xff]
    %v94 = vld [vmem:[#allocation4 + $0x30] sm:$0xff]
    %v95 = vld [vmem:[#allocation4 + $0x38] sm:$0xff]
    %v96 = vld [vmem:[#allocation4 + $0x40] sm:$0xff]
    %v97 = vld [vmem:[#allocation4 + $0x48] sm:$0xff]
    %v98 = vld [vmem:[#allocation4 + $0x50] sm:$0xff]
    %v99 = vld [vmem:[#allocation4 + $0x58] sm:$0xff]
    %v100 = vld [vmem:[#allocation4 + $0x60] sm:$0xff]
    %v101 = vld [vmem:[#allocation4 + $0x68] sm:$0xff]
    %v102 = vld [vmem:[#allocation4 + $0x70] sm:$0xff]
    %v103 = vld [vmem:[#allocation4 + $0x78] sm:$0xff]
    %v104 = vld [vmem:[#allocation4 + $0x80] sm:$0xff]
    %v105 = vld [vmem:[#allocation4 + $0x88] sm:$0xff]
    %v106 = vld [vmem:[#allocation4 + $0x90] sm:$0xff]
    %v107 = vld [vmem:[#allocation4 + $0x98] sm:$0xff]
    %v108 = vld [vmem:[#allocation4 + $0xa0] sm:$0xff]
    %v109 = vld [vmem:[#allocation4 + $0xa8] sm:$0xff]
    %v110 = vld [vmem:[#allocation4 + $0xb0] sm:$0xff]
    %v111 = vld [vmem:[#allocation4 + $0xb8] sm:$0xff]
    %v112 = vld [vmem:[#allocation4 + $0xc0] sm:$0xff]
    %v113 = vld [vmem:[#allocation4 + $0xc8] sm:$0xff]
    %v114 = vld [vmem:[#allocation4 + $0xd0] sm:$0xff]
    %v115 = vld [vmem:[#allocation4 + $0xd8] sm:$0xff]
    %v116 = vld [vmem:[#allocation4 + $0xe0] sm:$0xff]
    %v117 = vld [vmem:[#allocation4 + $0xe8] sm:$0xff]
    %v118 = vld [vmem:[#allocation4 + $0xf0] sm:$0xff]
    %v119 = vld [vmem:[#allocation4 + $0xf8] sm:$0xff]
    %v120 = vld [vmem:[#allocation4 + $0x100] sm:$0xff]
    %v121 = vld [vmem:[#allocation4 + $0x108] sm:$0xff]
    %v122 = vld [vmem:[#allocation4 + $0x110] sm:$0xff]
    %v123 = vld [vmem:[#allocation4 + $0x118] sm:$0xff]
    %v124 = vld [vmem:[#allocation4 + $0x120] sm:$0xff]
    %v125 = vld [vmem:[#allocation4 + $0x128] sm:$0xff]
    %v126 = vld [vmem:[#allocation4 + $0x130] sm:$0xff]
    %v127 = vld [vmem:[#allocation4 + $0x138] sm:$0xff]
    %v128 = vld [vmem:[#allocation4 + $0x140] sm:$0xff]
    %v129 = vld [vmem:[#allocation4 + $0x148] sm:$0xff]
    %v130 = vld [vmem:[#allocation4 + $0x150] sm:$0xff]
    %v131 = vld [vmem:[#allocation4 + $0x158] sm:$0xff]
    %v132 = vld [vmem:[#allocation4 + $0x160] sm:$0xff]
    %v133 = vld [vmem:[#allocation4 + $0x168] sm:$0xff]
    %v134 = vld [vmem:[#allocation4 + $0x170] sm:$0xff]
    %v135 = vld [vmem:[#allocation4 + $0x178] sm:$0xff]
    %v136 = vld [vmem:[#allocation4 + $0x180] sm:$0xff]
    %v137 = vld [vmem:[#allocation4 + $0x188] sm:$0xff]
    %v138 = vld [vmem:[#allocation4 + $0x190] sm:$0xff]
    %v139 = vld [vmem:[#allocation4 + $0x198] sm:$0xff]
    %v140 = vld [vmem:[#allocation4 + $0x1a0] sm:$0xff]
    %v141 = vld [vmem:[#allocation4 + $0x1a8] sm:$0xff]
    %v142 = vld [vmem:[#allocation4 + $0x1b0] sm:$0xff]
    %v143 = vld [vmem:[#allocation4 + $0x1b8] sm:$0xff]
    %v144 = vld [vmem:[#allocation4 + $0x1c0] sm:$0xff]
    %v145 = vld [vmem:[#allocation4 + $0x1c8] sm:$0xff]
    %v146 = vld [vmem:[#allocation4 + $0x1d0] sm:$0xff]
    %v147 = vld [vmem:[#allocation4 + $0x1d8] sm:$0xff]
    %v148 = vld [vmem:[#allocation4 + $0x1e0] sm:$0xff]
    %v149 = vld [vmem:[#allocation4 + $0x1e8] sm:$0xff]
    %v150 = vld [vmem:[#allocation4 + $0x1f0] sm:$0xff]
    %v151 = vld [vmem:[#allocation4 + $0x1f8] sm:$0xff]
    %v152 = vld [vmem:[#allocation4 + $0x200] sm:$0xff]
    %v153 = vld [vmem:[#allocation4 + $0x208] sm:$0xff]
    %v154 = vld [vmem:[#allocation4 + $0x210] sm:$0xff]
    %v155 = vld [vmem:[#allocation4 + $0x218] sm:$0xff]
    %v156 = vld [vmem:[#allocation4 + $0x220] sm:$0xff]
    %v157 = vld [vmem:[#allocation4 + $0x228] sm:$0xff]
    %v158 = vld [vmem:[#allocation4 + $0x230] sm:$0xff]
    %v159 = vld [vmem:[#allocation4 + $0x238] sm:$0xff]
    %v160 = vld [vmem:[#allocation4 + $0x240] sm:$0xff]
    %v161 = vld [vmem:[#allocation4 + $0x248] sm:$0xff]
    %v162 = vld [vmem:[#allocation4 + $0x250] sm:$0xff]
    %v163 = vld [vmem:[#allocation4 + $0x258] sm:$0xff]
    %v164 = vld [vmem:[#allocation4 + $0x260] sm:$0xff]
    %v165 = vld [vmem:[#allocation4 + $0x268] sm:$0xff]
    %v166 = vld [vmem:[#allocation4 + $0x270] sm:$0xff]
    %v167 = vld [vmem:[#allocation4 + $0x278] sm:$0xff]
    %v168 = vld [vmem:[#allocation4 + $0x280] sm:$0xff]
    %v169 = vld [vmem:[#allocation4 + $0x288] sm:$0xff]
    %v170 = vld [vmem:[#allocation4 + $0x290] sm:$0xff]
    %v171 = vld [vmem:[#allocation4 + $0x298] sm:$0xff]
    %v172 = vld [vmem:[#allocation4 + $0x2a0] sm:$0xff]
    %v173 = vld [vmem:[#allocation4 + $0x2a8] sm:$0xff]
    %v174 = vld [vmem:[#allocation4 + $0x2b0] sm:$0xff]
    %v175 = vld [vmem:[#allocation4 + $0x2b8] sm:$0xff]
    %v176 = vld [vmem:[#allocation4 + $0x2c0] sm:$0xff]
    %v177 = vld [vmem:[#allocation4 + $0x2c8] sm:$0xff]
    %v178 = vld [vmem:[#allocation4 + $0x2d0] sm:$0xff]
    %v179 = vld [vmem:[#allocation4 + $0x2d8] sm:$0xff]
    %v180 = vld [vmem:[#allocation4 + $0x2e0] sm:$0xff]
    %v181 = vld [vmem:[#allocation4 + $0x2e8] sm:$0xff]
    %v182 = vld [vmem:[#allocation4 + $0x2f0] sm:$0xff]
    %v183 = vld [vmem:[#allocation4 + $0x2f8] sm:$0xff]
    %v184 = vld [vmem:[#allocation4 + $0x300] sm:$0xff]
    %v185 = vld [vmem:[#allocation4 + $0x308] sm:$0xff]
    %v186 = vld [vmem:[#allocation4 + $0x310] sm:$0xff]
    %v187 = vld [vmem:[#allocation4 + $0x318] sm:$0xff]
    %v188 = vld [vmem:[#allocation4 + $0x320] sm:$0xff]
    %v189 = vld [vmem:[#allocation4 + $0x328] sm:$0xff]
    %v190 = vld [vmem:[#allocation4 + $0x330] sm:$0xff]
    %v191 = vld [vmem:[#allocation4 + $0x338] sm:$0xff]
    %v192 = vld [vmem:[#allocation4 + $0x340] sm:$0xff]
    %v193 = vld [vmem:[#allocation4 + $0x348] sm:$0xff]
    %v194 = vld [vmem:[#allocation4 + $0x350] sm:$0xff]
    %v195 = vld [vmem:[#allocation4 + $0x358] sm:$0xff]
    %v196 = vld [vmem:[#allocation4 + $0x360] sm:$0xff]
    %v197 = vld [vmem:[#allocation4 + $0x368] sm:$0xff]
    %v198 = vld [vmem:[#allocation4 + $0x370] sm:$0xff]
    %v199 = vld [vmem:[#allocation4 + $0x378] sm:$0xff]
    %v200 = vld [vmem:[#allocation4 + $0x380] sm:$0xff]
    %v201 = vld [vmem:[#allocation4 + $0x388] sm:$0xff]
    %v202 = vld [vmem:[#allocation4 + $0x390] sm:$0xff]
    %v203 = vld [vmem:[#allocation4 + $0x398] sm:$0xff]
    %v204 = vld [vmem:[#allocation4 + $0x3a0] sm:$0xff]
    %v205 = vld [vmem:[#allocation4 + $0x3a8] sm:$0xff]
    %v206 = vld [vmem:[#allocation4 + $0x3b0] sm:$0xff]
    %v207 = vld [vmem:[#allocation4 + $0x3b8] sm:$0xff]
    %v208 = vld [vmem:[#allocation4 + $0x3c0] sm:$0xff]
    %v209 = vld [vmem:[#allocation4 + $0x3c8] sm:$0xff]
    %v210 = vld [vmem:[#allocation4 + $0x3d0] sm:$0xff]
    %v211 = vld [vmem:[#allocation4 + $0x3d8] sm:$0xff]
    %v212 = vld [vmem:[#allocation4 + $0x3e0] sm:$0xff]
    %v213 = vld [vmem:[#allocation4 + $0x3e8] sm:$0xff]
    %v214 = vld [vmem:[#allocation4 + $0x3f0] sm:$0xff]
    %v215 = vld [vmem:[#allocation4 + $0x3f8] sm:$0xff]
    %v216 = vld [vmem:[#allocation6] sm:$0xff]
    %v217 = vld [vmem:[#allocation6 + $0x8] sm:$0xff]
    %v218 = vld [vmem:[#allocation6 + $0x10] sm:$0xff]
    %v219 = vld [vmem:[#allocation6 + $0x18] sm:$0xff]
    %v220 = vld [vmem:[#allocation6 + $0x20] sm:$0xff]
    %v221 = vld [vmem:[#allocation6 + $0x28] sm:$0xff]
    %v222 = vld [vmem:[#allocation6 + $0x30] sm:$0xff]
    %v223 = vld [vmem:[#allocation6 + $0x38] sm:$0xff]
    %v224 = vld [vmem:[#allocation6 + $0x40] sm:$0xff]
    %v225 = vld [vmem:[#allocation6 + $0x48] sm:$0xff]
    %v226 = vld [vmem:[#allocation6 + $0x50] sm:$0xff]
    %v227 = vld [vmem:[#allocation6 + $0x58] sm:$0xff]
    %v228 = vld [vmem:[#allocation6 + $0x60] sm:$0xff]
    %v229 = vld [vmem:[#allocation6 + $0x68] sm:$0xff]
    %v230 = vld [vmem:[#allocation6 + $0x70] sm:$0xff]
    %v231 = vld [vmem:[#allocation6 + $0x78] sm:$0xff]
    %v232 = vld [vmem:[#allocation6 + $0x80] sm:$0xff]
    %v233 = vld [vmem:[#allocation6 + $0x88] sm:$0xff]
    %v234 = vld [vmem:[#allocation6 + $0x90] sm:$0xff]
    %v235 = vld [vmem:[#allocation6 + $0x98] sm:$0xff]
    %v236 = vld [vmem:[#allocation6 + $0xa0] sm:$0xff]
    %v237 = vld [vmem:[#allocation6 + $0xa8] sm:$0xff]
    %v238 = vld [vmem:[#allocation6 + $0xb0] sm:$0xff]
    %v239 = vld [vmem:[#allocation6 + $0xb8] sm:$0xff]
    %v240 = vld [vmem:[#allocation6 + $0xc0] sm:$0xff]
    %v241 = vld [vmem:[#allocation6 + $0xc8] sm:$0xff]
    %v242 = vld [vmem:[#allocation6 + $0xd0] sm:$0xff]
    %v243 = vld [vmem:[#allocation6 + $0xd8] sm:$0xff]
    %v244 = vld [vmem:[#allocation6 + $0xe0] sm:$0xff]
    %v245 = vld [vmem:[#allocation6 + $0xe8] sm:$0xff]
    %v246 = vld [vmem:[#allocation6 + $0xf0] sm:$0xff]
    %v247 = vld [vmem:[#allocation6 + $0xf8] sm:$0xff]
    %v248 = vld [vmem:[#allocation6 + $0x100] sm:$0xff]
    %v249 = vld [vmem:[#allocation6 + $0x108] sm:$0xff]
    %v250 = vld [vmem:[#allocation6 + $0x110] sm:$0xff]
    %v251 = vld [vmem:[#allocation6 + $0x118] sm:$0xff]
    %v252 = vld [vmem:[#allocation6 + $0x120] sm:$0xff]
    %v253 = vld [vmem:[#allocation6 + $0x128] sm:$0xff]
    %v254 = vld [vmem:[#allocation6 + $0x130] sm:$0xff]
    %v255 = vld [vmem:[#allocation6 + $0x138] sm:$0xff]
    %v256 = vld [vmem:[#allocation6 + $0x140] sm:$0xff]
    %v257 = vld [vmem:[#allocation6 + $0x148] sm:$0xff]
    %v258 = vld [vmem:[#allocation6 + $0x150] sm:$0xff]
    %v259 = vld [vmem:[#allocation6 + $0x158] sm:$0xff]
    %v260 = vld [vmem:[#allocation6 + $0x160] sm:$0xff]
    %v261 = vld [vmem:[#allocation6 + $0x168] sm:$0xff]
    %v262 = vld [vmem:[#allocation6 + $0x170] sm:$0xff]
    %v263 = vld [vmem:[#allocation6 + $0x178] sm:$0xff]
    %v264 = vld [vmem:[#allocation6 + $0x180] sm:$0xff]
    %v265 = vld [vmem:[#allocation6 + $0x188] sm:$0xff]
    %v266 = vld [vmem:[#allocation6 + $0x190] sm:$0xff]
    %v267 = vld [vmem:[#allocation6 + $0x198] sm:$0xff]
    %v268 = vld [vmem:[#allocation6 + $0x1a0] sm:$0xff]
    %v269 = vld [vmem:[#allocation6 + $0x1a8] sm:$0xff]
    %v270 = vld [vmem:[#allocation6 + $0x1b0] sm:$0xff]
    %v271 = vld [vmem:[#allocation6 + $0x1b8] sm:$0xff]
    %v272 = vld [vmem:[#allocation6 + $0x1c0] sm:$0xff]
    %v273 = vld [vmem:[#allocation6 + $0x1c8] sm:$0xff]
    %v274 = vld [vmem:[#allocation6 + $0x1d0] sm:$0xff]
    %v275 = vld [vmem:[#allocation6 + $0x1d8] sm:$0xff]
    %v276 = vld [vmem:[#allocation6 + $0x1e0] sm:$0xff]
    %v277 = vld [vmem:[#allocation6 + $0x1e8] sm:$0xff]
    %v278 = vld [vmem:[#allocation6 + $0x1f0] sm:$0xff]
    %v279 = vld [vmem:[#allocation6 + $0x1f8] sm:$0xff]
    %v280 = vld [vmem:[#allocation6 + $0x200] sm:$0xff]
    %v281 = vld [vmem:[#allocation6 + $0x208] sm:$0xff]
    %v282 = vld [vmem:[#allocation6 + $0x210] sm:$0xff]
    %v283 = vld [vmem:[#allocation6 + $0x218] sm:$0xff]
    %v284 = vld [vmem:[#allocation6 + $0x220] sm:$0xff]
    %v285 = vld [vmem:[#allocation6 + $0x228] sm:$0xff]
    %v286 = vld [vmem:[#allocation6 + $0x230] sm:$0xff]
    %v287 = vld [vmem:[#allocation6 + $0x238] sm:$0xff]
    %v288 = vld [vmem:[#allocation6 + $0x240] sm:$0xff]
    %v289 = vld [vmem:[#allocation6 + $0x248] sm:$0xff]
    %v290 = vld [vmem:[#allocation6 + $0x250] sm:$0xff]
    %v291 = vld [vmem:[#allocation6 + $0x258] sm:$0xff]
    %v292 = vld [vmem:[#allocation6 + $0x260] sm:$0xff]
    %v293 = vld [vmem:[#allocation6 + $0x268] sm:$0xff]
    %v294 = vld [vmem:[#allocation6 + $0x270] sm:$0xff]
    %v295 = vld [vmem:[#allocation6 + $0x278] sm:$0xff]
    %v296 = vld [vmem:[#allocation6 + $0x280] sm:$0xff]
    %v297 = vld [vmem:[#allocation6 + $0x288] sm:$0xff]
    %v298 = vld [vmem:[#allocation6 + $0x290] sm:$0xff]
    %v299 = vld [vmem:[#allocation6 + $0x298] sm:$0xff]
    %v300 = vld [vmem:[#allocation6 + $0x2a0] sm:$0xff]
    %v301 = vld [vmem:[#allocation6 + $0x2a8] sm:$0xff]
    %v302 = vld [vmem:[#allocation6 + $0x2b0] sm:$0xff]
    %v303 = vld [vmem:[#allocation6 + $0x2b8] sm:$0xff]
    %v304 = vld [vmem:[#allocation6 + $0x2c0] sm:$0xff]
    %v305 = vld [vmem:[#allocation6 + $0x2c8] sm:$0xff]
    %v306 = vld [vmem:[#allocation6 + $0x2d0] sm:$0xff]
    %v307 = vld [vmem:[#allocation6 + $0x2d8] sm:$0xff]
    %v308 = vld [vmem:[#allocation6 + $0x2e0] sm:$0xff]
    %v309 = vld [vmem:[#allocation6 + $0x2e8] sm:$0xff]
    %v310 = vld [vmem:[#allocation6 + $0x2f0] sm:$0xff]
    %v311 = vld [vmem:[#allocation6 + $0x2f8] sm:$0xff]
    %v312 = vld [vmem:[#allocation6 + $0x300] sm:$0xff]
    %v313 = vld [vmem:[#allocation6 + $0x308] sm:$0xff]
    %v314 = vld [vmem:[#allocation6 + $0x310] sm:$0xff]
    %v315 = vld [vmem:[#allocation6 + $0x318] sm:$0xff]
    %v316 = vld [vmem:[#allocation6 + $0x320] sm:$0xff]
    %v317 = vld [vmem:[#allocation6 + $0x328] sm:$0xff]
    %v318 = vld [vmem:[#allocation6 + $0x330] sm:$0xff]
    %v319 = vld [vmem:[#allocation6 + $0x338] sm:$0xff]
    %v320 = vld [vmem:[#allocation6 + $0x340] sm:$0xff]
    %v321 = vld [vmem:[#allocation6 + $0x348] sm:$0xff]
    %v322 = vld [vmem:[#allocation6 + $0x350] sm:$0xff]
    %v323 = vld [vmem:[#allocation6 + $0x358] sm:$0xff]
    %v324 = vld [vmem:[#allocation6 + $0x360] sm:$0xff]
    %v325 = vld [vmem:[#allocation6 + $0x368] sm:$0xff]
    %v326 = vld [vmem:[#allocation6 + $0x370] sm:$0xff]
    %v327 = vld [vmem:[#allocation6 + $0x378] sm:$0xff]
    %v328 = vld [vmem:[#allocation6 + $0x380] sm:$0xff]
    %v329 = vld [vmem:[#allocation6 + $0x388] sm:$0xff]
    %v330 = vld [vmem:[#allocation6 + $0x390] sm:$0xff]
    %v331 = vld [vmem:[#allocation6 + $0x398] sm:$0xff]
    %v332 = vld [vmem:[#allocation6 + $0x3a0] sm:$0xff]
    %v333 = vld [vmem:[#allocation6 + $0x3a8] sm:$0xff]
    %v334 = vld [vmem:[#allocation6 + $0x3b0] sm:$0xff]
    %v335 = vld [vmem:[#allocation6 + $0x3b8] sm:$0xff]
    %v336 = vld [vmem:[#allocation6 + $0x3c0] sm:$0xff]
    %v337 = vld [vmem:[#allocation6 + $0x3c8] sm:$0xff]
    %v338 = vld [vmem:[#allocation6 + $0x3d0] sm:$0xff]
    %v339 = vld [vmem:[#allocation6 + $0x3d8] sm:$0xff]
    %v340 = vld [vmem:[#allocation6 + $0x3e0] sm:$0xff]
    %v341 = vld [vmem:[#allocation6 + $0x3e8] sm:$0xff]
    %v342 = vld [vmem:[#allocation6 + $0x3f0] sm:$0xff]
    %v343 = vld [vmem:[#allocation6 + $0x3f8] sm:$0xff]
    %v472 = vunpack.c.l.b16 %v216
    %v473 = vunpack.c.h.b16 %v216
    %v474 = vunpack.c.l.b16 %v217
    %v475 = vunpack.c.h.b16 %v217
    %v476 = vunpack.c.l.b16 %v218
    %v477 = vunpack.c.h.b16 %v218
    %v478 = vunpack.c.l.b16 %v219
    %v479 = vunpack.c.h.b16 %v219
    %v480 = vunpack.c.l.b16 %v220
    %v481 = vunpack.c.h.b16 %v220
    %v482 = vunpack.c.l.b16 %v221
    %v483 = vunpack.c.h.b16 %v221
    %v484 = vunpack.c.l.b16 %v222
    %v485 = vunpack.c.h.b16 %v222
    %v486 = vunpack.c.l.b16 %v223
    %v487 = vunpack.c.h.b16 %v223
    %v488 = vunpack.c.l.b16 %v224
    %v489 = vunpack.c.h.b16 %v224
    %v490 = vunpack.c.l.b16 %v225
    %v491 = vunpack.c.h.b16 %v225
    %v492 = vunpack.c.l.b16 %v226
    %v493 = vunpack.c.h.b16 %v226
    %v494 = vunpack.c.l.b16 %v227
    %v495 = vunpack.c.h.b16 %v227
    %v496 = vunpack.c.l.b16 %v228
    %v497 = vunpack.c.h.b16 %v228
    %v498 = vunpack.c.l.b16 %v229
    %v499 = vunpack.c.h.b16 %v229
    %v500 = vunpack.c.l.b16 %v230
    %v501 = vunpack.c.h.b16 %v230
    %v502 = vunpack.c.l.b16 %v231
    %v503 = vunpack.c.h.b16 %v231
    %v504 = vunpack.c.l.b16 %v232
    %v505 = vunpack.c.h.b16 %v232
    %v506 = vunpack.c.l.b16 %v233
    %v507 = vunpack.c.h.b16 %v233
    %v508 = vunpack.c.l.b16 %v234
    %v509 = vunpack.c.h.b16 %v234
    %v510 = vunpack.c.l.b16 %v235
    %v511 = vunpack.c.h.b16 %v235
    %v512 = vunpack.c.l.b16 %v236
    %v513 = vunpack.c.h.b16 %v236
    %v514 = vunpack.c.l.b16 %v237
    %v515 = vunpack.c.h.b16 %v237
    %v516 = vunpack.c.l.b16 %v238
    %v517 = vunpack.c.h.b16 %v238
    %v518 = vunpack.c.l.b16 %v239
    %v519 = vunpack.c.h.b16 %v239
    %v520 = vunpack.c.l.b16 %v240
    %v521 = vunpack.c.h.b16 %v240
    %v522 = vunpack.c.l.b16 %v241
    %v523 = vunpack.c.h.b16 %v241
    %v524 = vunpack.c.l.b16 %v242
    %v525 = vunpack.c.h.b16 %v242
    %v526 = vunpack.c.l.b16 %v243
    %v527 = vunpack.c.h.b16 %v243
    %v528 = vunpack.c.l.b16 %v244
    %v529 = vunpack.c.h.b16 %v244
    %v530 = vunpack.c.l.b16 %v245
    %v531 = vunpack.c.h.b16 %v245
    %v532 = vunpack.c.l.b16 %v246
    %v533 = vunpack.c.h.b16 %v246
    %v534 = vunpack.c.l.b16 %v247
    %v535 = vunpack.c.h.b16 %v247
    %v536 = vunpack.c.l.b16 %v248
    %v537 = vunpack.c.h.b16 %v248
    %v538 = vunpack.c.l.b16 %v249
    %v539 = vunpack.c.h.b16 %v249
    %v540 = vunpack.c.l.b16 %v250
    %v541 = vunpack.c.h.b16 %v250
    %v542 = vunpack.c.l.b16 %v251
    %v543 = vunpack.c.h.b16 %v251
    %v544 = vunpack.c.l.b16 %v252
    %v545 = vunpack.c.h.b16 %v252
    %v546 = vunpack.c.l.b16 %v253
    %v547 = vunpack.c.h.b16 %v253
    %v548 = vunpack.c.l.b16 %v254
    %v549 = vunpack.c.h.b16 %v254
    %v550 = vunpack.c.l.b16 %v255
    %v551 = vunpack.c.h.b16 %v255
    %v552 = vunpack.c.l.b16 %v256
    %v553 = vunpack.c.h.b16 %v256
    %v554 = vunpack.c.l.b16 %v257
    %v555 = vunpack.c.h.b16 %v257
    %v556 = vunpack.c.l.b16 %v258
    %v557 = vunpack.c.h.b16 %v258
    %v558 = vunpack.c.l.b16 %v259
    %v559 = vunpack.c.h.b16 %v259
    %v560 = vunpack.c.l.b16 %v260
    %v561 = vunpack.c.h.b16 %v260
    %v562 = vunpack.c.l.b16 %v261
    %v563 = vunpack.c.h.b16 %v261
    %v564 = vunpack.c.l.b16 %v262
    %v565 = vunpack.c.h.b16 %v262
    %v566 = vunpack.c.l.b16 %v263
    %v567 = vunpack.c.h.b16 %v263
    %v568 = vunpack.c.l.b16 %v264
    %v569 = vunpack.c.h.b16 %v264
    %v570 = vunpack.c.l.b16 %v265
    %v571 = vunpack.c.h.b16 %v265
    %v572 = vunpack.c.l.b16 %v266
    %v573 = vunpack.c.h.b16 %v266
    %v574 = vunpack.c.l.b16 %v267
    %v575 = vunpack.c.h.b16 %v267
    %v576 = vunpack.c.l.b16 %v268
    %v577 = vunpack.c.h.b16 %v268
    %v578 = vunpack.c.l.b16 %v269
    %v579 = vunpack.c.h.b16 %v269
    %v580 = vunpack.c.l.b16 %v270
    %v581 = vunpack.c.h.b16 %v270
    %v582 = vunpack.c.l.b16 %v271
    %v583 = vunpack.c.h.b16 %v271
    %v584 = vunpack.c.l.b16 %v272
    %v585 = vunpack.c.h.b16 %v272
    %v586 = vunpack.c.l.b16 %v273
    %v587 = vunpack.c.h.b16 %v273
    %v588 = vunpack.c.l.b16 %v274
    %v589 = vunpack.c.h.b16 %v274
    %v590 = vunpack.c.l.b16 %v275
    %v591 = vunpack.c.h.b16 %v275
    %v592 = vunpack.c.l.b16 %v276
    %v593 = vunpack.c.h.b16 %v276
    %v594 = vunpack.c.l.b16 %v277
    %v595 = vunpack.c.h.b16 %v277
    %v596 = vunpack.c.l.b16 %v278
    %v597 = vunpack.c.h.b16 %v278
    %v598 = vunpack.c.l.b16 %v279
    %v599 = vunpack.c.h.b16 %v279
    %v600 = vunpack.c.l.b16 %v280
    %v601 = vunpack.c.h.b16 %v280
    %v602 = vunpack.c.l.b16 %v281
    %v603 = vunpack.c.h.b16 %v281
    %v604 = vunpack.c.l.b16 %v282
    %v605 = vunpack.c.h.b16 %v282
    %v606 = vunpack.c.l.b16 %v283
    %v607 = vunpack.c.h.b16 %v283
    %v608 = vunpack.c.l.b16 %v284
    %v609 = vunpack.c.h.b16 %v284
    %v610 = vunpack.c.l.b16 %v285
    %v611 = vunpack.c.h.b16 %v285
    %v612 = vunpack.c.l.b16 %v286
    %v613 = vunpack.c.h.b16 %v286
    %v614 = vunpack.c.l.b16 %v287
    %v615 = vunpack.c.h.b16 %v287
    %v616 = vunpack.c.l.b16 %v288
    %v617 = vunpack.c.h.b16 %v288
    %v618 = vunpack.c.l.b16 %v289
    %v619 = vunpack.c.h.b16 %v289
    %v620 = vunpack.c.l.b16 %v290
    %v621 = vunpack.c.h.b16 %v290
    %v622 = vunpack.c.l.b16 %v291
    %v623 = vunpack.c.h.b16 %v291
    %v624 = vunpack.c.l.b16 %v292
    %v625 = vunpack.c.h.b16 %v292
    %v626 = vunpack.c.l.b16 %v293
    %v627 = vunpack.c.h.b16 %v293
    %v628 = vunpack.c.l.b16 %v294
    %v629 = vunpack.c.h.b16 %v294
    %v630 = vunpack.c.l.b16 %v295
    %v631 = vunpack.c.h.b16 %v295
    %v632 = vunpack.c.l.b16 %v296
    %v633 = vunpack.c.h.b16 %v296
    %v634 = vunpack.c.l.b16 %v297
    %v635 = vunpack.c.h.b16 %v297
    %v636 = vunpack.c.l.b16 %v298
    %v637 = vunpack.c.h.b16 %v298
    %v638 = vunpack.c.l.b16 %v299
    %v639 = vunpack.c.h.b16 %v299
    %v640 = vunpack.c.l.b16 %v300
    %v641 = vunpack.c.h.b16 %v300
    %v642 = vunpack.c.l.b16 %v301
    %v643 = vunpack.c.h.b16 %v301
    %v644 = vunpack.c.l.b16 %v302
    %v645 = vunpack.c.h.b16 %v302
    %v646 = vunpack.c.l.b16 %v303
    %v647 = vunpack.c.h.b16 %v303
    %v648 = vunpack.c.l.b16 %v304
    %v649 = vunpack.c.h.b16 %v304
    %v650 = vunpack.c.l.b16 %v305
    %v651 = vunpack.c.h.b16 %v305
    %v652 = vunpack.c.l.b16 %v306
    %v653 = vunpack.c.h.b16 %v306
    %v654 = vunpack.c.l.b16 %v307
    %v655 = vunpack.c.h.b16 %v307
    %v656 = vunpack.c.l.b16 %v308
    %v657 = vunpack.c.h.b16 %v308
    %v658 = vunpack.c.l.b16 %v309
    %v659 = vunpack.c.h.b16 %v309
    %v660 = vunpack.c.l.b16 %v310
    %v661 = vunpack.c.h.b16 %v310
    %v662 = vunpack.c.l.b16 %v311
    %v663 = vunpack.c.h.b16 %v311
    %v664 = vunpack.c.l.b16 %v312
    %v665 = vunpack.c.h.b16 %v312
    %v666 = vunpack.c.l.b16 %v313
    %v667 = vunpack.c.h.b16 %v313
    %v668 = vunpack.c.l.b16 %v314
    %v669 = vunpack.c.h.b16 %v314
    %v670 = vunpack.c.l.b16 %v315
    %v671 = vunpack.c.h.b16 %v315
    %v672 = vunpack.c.l.b16 %v316
    %v673 = vunpack.c.h.b16 %v316
    %v674 = vunpack.c.l.b16 %v317
    %v675 = vunpack.c.h.b16 %v317
    %v676 = vunpack.c.l.b16 %v318
    %v677 = vunpack.c.h.b16 %v318
    %v678 = vunpack.c.l.b16 %v319
    %v679 = vunpack.c.h.b16 %v319
    %v680 = vunpack.c.l.b16 %v320
    %v681 = vunpack.c.h.b16 %v320
    %v682 = vunpack.c.l.b16 %v321
    %v683 = vunpack.c.h.b16 %v321
    %v684 = vunpack.c.l.b16 %v322
    %v685 = vunpack.c.h.b16 %v322
    %v686 = vunpack.c.l.b16 %v323
    %v687 = vunpack.c.h.b16 %v323
    %v688 = vunpack.c.l.b16 %v324
    %v689 = vunpack.c.h.b16 %v324
    %v690 = vunpack.c.l.b16 %v325
    %v691 = vunpack.c.h.b16 %v325
    %v692 = vunpack.c.l.b16 %v326
    %v693 = vunpack.c.h.b16 %v326
    %v694 = vunpack.c.l.b16 %v327
    %v695 = vunpack.c.h.b16 %v327
    %v696 = vunpack.c.l.b16 %v328
    %v697 = vunpack.c.h.b16 %v328
    %v698 = vunpack.c.l.b16 %v329
    %v699 = vunpack.c.h.b16 %v329
    %v700 = vunpack.c.l.b16 %v330
    %v701 = vunpack.c.h.b16 %v330
    %v702 = vunpack.c.l.b16 %v331
    %v703 = vunpack.c.h.b16 %v331
    %v704 = vunpack.c.l.b16 %v332
    %v705 = vunpack.c.h.b16 %v332
    %v706 = vunpack.c.l.b16 %v333
    %v707 = vunpack.c.h.b16 %v333
    %v708 = vunpack.c.l.b16 %v334
    %v709 = vunpack.c.h.b16 %v334
    %v710 = vunpack.c.l.b16 %v335
    %v711 = vunpack.c.h.b16 %v335
    %v712 = vunpack.c.l.b16 %v336
    %v713 = vunpack.c.h.b16 %v336
    %v714 = vunpack.c.l.b16 %v337
    %v715 = vunpack.c.h.b16 %v337
    %v716 = vunpack.c.l.b16 %v338
    %v717 = vunpack.c.h.b16 %v338
    %v718 = vunpack.c.l.b16 %v339
    %v719 = vunpack.c.h.b16 %v339
    %v720 = vunpack.c.l.b16 %v340
    %v721 = vunpack.c.h.b16 %v340
    %v722 = vunpack.c.l.b16 %v341
    %v723 = vunpack.c.h.b16 %v341
    %v724 = vunpack.c.l.b16 %v342
    %v725 = vunpack.c.h.b16 %v342
    %v726 = vunpack.c.l.b16 %v343
    %v727 = vunpack.c.h.b16 %v343
    %v728 = vpack.c.b16 %v476, %v472
    %v729 = vpack.c.b16 %v477, %v473
    %v730 = vpack.c.b16 %v478, %v474
    %v731 = vpack.c.b16 %v479, %v475
    %v732 = vpack.c.b16 %v484, %v480
    %v733 = vpack.c.b16 %v485, %v481
    %v734 = vpack.c.b16 %v486, %v482
    %v735 = vpack.c.b16 %v487, %v483
    %v736 = vpack.c.b16 %v492, %v488
    %v737 = vpack.c.b16 %v493, %v489
    %v738 = vpack.c.b16 %v494, %v490
    %v739 = vpack.c.b16 %v495, %v491
    %v740 = vpack.c.b16 %v500, %v496
    %v741 = vpack.c.b16 %v501, %v497
    %v742 = vpack.c.b16 %v502, %v498
    %v743 = vpack.c.b16 %v503, %v499
    %v744 = vpack.c.b16 %v508, %v504
    %v745 = vpack.c.b16 %v509, %v505
    %v746 = vpack.c.b16 %v510, %v506
    %v747 = vpack.c.b16 %v511, %v507
    %v748 = vpack.c.b16 %v516, %v512
    %v749 = vpack.c.b16 %v517, %v513
    %v750 = vpack.c.b16 %v518, %v514
    %v751 = vpack.c.b16 %v519, %v515
    %v752 = vpack.c.b16 %v524, %v520
    %v753 = vpack.c.b16 %v525, %v521
    %v754 = vpack.c.b16 %v526, %v522
    %v755 = vpack.c.b16 %v527, %v523
    %v756 = vpack.c.b16 %v532, %v528
    %v757 = vpack.c.b16 %v533, %v529
    %v758 = vpack.c.b16 %v534, %v530
    %v759 = vpack.c.b16 %v535, %v531
    %v760 = vpack.c.b16 %v540, %v536
    %v761 = vpack.c.b16 %v541, %v537
    %v762 = vpack.c.b16 %v542, %v538
    %v763 = vpack.c.b16 %v543, %v539
    %v764 = vpack.c.b16 %v548, %v544
    %v765 = vpack.c.b16 %v549, %v545
    %v766 = vpack.c.b16 %v550, %v546
    %v767 = vpack.c.b16 %v551, %v547
    %v768 = vpack.c.b16 %v556, %v552
    %v769 = vpack.c.b16 %v557, %v553
    %v770 = vpack.c.b16 %v558, %v554
    %v771 = vpack.c.b16 %v559, %v555
    %v772 = vpack.c.b16 %v564, %v560
    %v773 = vpack.c.b16 %v565, %v561
    %v774 = vpack.c.b16 %v566, %v562
    %v775 = vpack.c.b16 %v567, %v563
    %v776 = vpack.c.b16 %v572, %v568
    %v777 = vpack.c.b16 %v573, %v569
    %v778 = vpack.c.b16 %v574, %v570
    %v779 = vpack.c.b16 %v575, %v571
    %v780 = vpack.c.b16 %v580, %v576
    %v781 = vpack.c.b16 %v581, %v577
    %v782 = vpack.c.b16 %v582, %v578
    %v783 = vpack.c.b16 %v583, %v579
    %v784 = vpack.c.b16 %v588, %v584
    %v785 = vpack.c.b16 %v589, %v585
    %v786 = vpack.c.b16 %v590, %v586
    %v787 = vpack.c.b16 %v591, %v587
    %v788 = vpack.c.b16 %v596, %v592
    %v789 = vpack.c.b16 %v597, %v593
    %v790 = vpack.c.b16 %v598, %v594
    %v791 = vpack.c.b16 %v599, %v595
    %v792 = vpack.c.b16 %v604, %v600
    %v793 = vpack.c.b16 %v605, %v601
    %v794 = vpack.c.b16 %v606, %v602
    %v795 = vpack.c.b16 %v607, %v603
    %v796 = vpack.c.b16 %v612, %v608
    %v797 = vpack.c.b16 %v613, %v609
    %v798 = vpack.c.b16 %v614, %v610
    %v799 = vpack.c.b16 %v615, %v611
    %v800 = vpack.c.b16 %v620, %v616
    %v801 = vpack.c.b16 %v621, %v617
    %v802 = vpack.c.b16 %v622, %v618
    %v803 = vpack.c.b16 %v623, %v619
    %v804 = vpack.c.b16 %v628, %v624
    %v805 = vpack.c.b16 %v629, %v625
    %v806 = vpack.c.b16 %v630, %v626
    %v807 = vpack.c.b16 %v631, %v627
    %v808 = vpack.c.b16 %v636, %v632
    %v809 = vpack.c.b16 %v637, %v633
    %v810 = vpack.c.b16 %v638, %v634
    %v811 = vpack.c.b16 %v639, %v635
    %v812 = vpack.c.b16 %v644, %v640
    %v813 = vpack.c.b16 %v645, %v641
    %v814 = vpack.c.b16 %v646, %v642
    %v815 = vpack.c.b16 %v647, %v643
    %v816 = vpack.c.b16 %v652, %v648
    %v817 = vpack.c.b16 %v653, %v649
    %v818 = vpack.c.b16 %v654, %v650
    %v819 = vpack.c.b16 %v655, %v651
    %v820 = vpack.c.b16 %v660, %v656
    %v821 = vpack.c.b16 %v661, %v657
    %v822 = vpack.c.b16 %v662, %v658
    %v823 = vpack.c.b16 %v663, %v659
    %v824 = vpack.c.b16 %v668, %v664
    %v825 = vpack.c.b16 %v669, %v665
    %v826 = vpack.c.b16 %v670, %v666
    %v827 = vpack.c.b16 %v671, %v667
    %v828 = vpack.c.b16 %v676, %v672
    %v829 = vpack.c.b16 %v677, %v673
    %v830 = vpack.c.b16 %v678, %v674
    %v831 = vpack.c.b16 %v679, %v675
    %v832 = vpack.c.b16 %v684, %v680
    %v833 = vpack.c.b16 %v685, %v681
    %v834 = vpack.c.b16 %v686, %v682
    %v835 = vpack.c.b16 %v687, %v683
    %v836 = vpack.c.b16 %v692, %v688
    %v837 = vpack.c.b16 %v693, %v689
    %v838 = vpack.c.b16 %v694, %v690
    %v839 = vpack.c.b16 %v695, %v691
    %v840 = vpack.c.b16 %v700, %v696
    %v841 = vpack.c.b16 %v701, %v697
    %v842 = vpack.c.b16 %v702, %v698
    %v843 = vpack.c.b16 %v703, %v699
    %v844 = vpack.c.b16 %v708, %v704
    %v845 = vpack.c.b16 %v709, %v705
    %v846 = vpack.c.b16 %v710, %v706
    %v847 = vpack.c.b16 %v711, %v707
    %v848 = vpack.c.b16 %v716, %v712
    %v849 = vpack.c.b16 %v717, %v713
    %v850 = vpack.c.b16 %v718, %v714
    %v851 = vpack.c.b16 %v719, %v715
    %v852 = vpack.c.b16 %v724, %v720
    %v853 = vpack.c.b16 %v725, %v721
    %v854 = vpack.c.b16 %v726, %v722
    %v855 = vpack.c.b16 %v727, %v723
    %984 = vmatprep.subr.bf16.mxu0 %v757
    %985 = vmatpush1.bf16.msra.mxu0 %v756
    %986 = vmatprep.subr.bf16.mxu0 %v753
    %987 = vmatpush1.bf16.msra.mxu0 %v752
    %988 = vmatprep.subr.bf16.mxu0 %v749
    %989 = vmatpush1.bf16.msra.mxu0 %v748
    %990 = vmatprep.subr.bf16.mxu0 %v745
    %991 = vmatpush1.bf16.msra.mxu0 %v744
    %992 = vmatprep.subr.bf16.mxu0 %v741
    %993 = vmatpush1.bf16.msra.mxu0 %v740
    %994 = vmatprep.subr.bf16.mxu0 %v737
    %995 = vmatpush1.bf16.msra.mxu0 %v736
    %996 = vmatprep.subr.bf16.mxu0 %v733
    %997 = vmatpush1.bf16.msra.mxu0 %v732
    %998 = vmatprep.subr.bf16.mxu0 %v729
    %999 = vmatpush1.bf16.msra.mxu0 %v728
    %1000 = vmatprep.subr.bf16.mxu0 %v789
    %1001 = vmatpush2.bf16.msra.mxu0 %v788
    %1002 = vmatprep.subr.bf16.mxu0 %v785
    %1003 = vmatpush2.bf16.msra.mxu0 %v784
    %1004 = vmatprep.subr.bf16.mxu0 %v781
    %1005 = vmatpush2.bf16.msra.mxu0 %v780
    %1006 = vmatprep.subr.bf16.mxu0 %v777
    %1007 = vmatpush2.bf16.msra.mxu0 %v776
    %1008 = vmatprep.subr.bf16.mxu0 %v773
    %1009 = vmatpush2.bf16.msra.mxu0 %v772
    %1010 = vmatprep.subr.bf16.mxu0 %v769
    %1011 = vmatpush2.bf16.msra.mxu0 %v768
    %1012 = vmatprep.subr.bf16.mxu0 %v765
    %1013 = vmatpush2.bf16.msra.mxu0 %v764
    %1014 = vmatprep.subr.bf16.mxu0 %v761
    %1015 = vmatpush2.bf16.msra.mxu0 %v760
    %1016 = vmatprep.mubr.bf16.mxu0 %v81
    %1017 = vmatmul.mubr.bf16.gmra.mxu0 %v80
    %v1018 = vpop.f32.mrf.mxu0
    %v1019 = vadd.f32 0.0, %v1018
    %v1020 = vpop.f32.mrf.mxu0
    %v1021 = vadd.f32 0.0, %v1020
    %v1022 = vpop.f32.mrf.mxu0
    %v1023 = vadd.f32 0.0, %v1022
    %v1024 = vpop.f32.mrf.mxu0
    %v1025 = vadd.f32 0.0, %v1024
    %1026 = vmatprep.mubr.bf16.mxu0 %v85
    %1027 = vmatmul.mubr.bf16.gmra.mxu0 %v84
    %v1028 = vpop.f32.mrf.mxu0
    %v1029 = vadd.f32 0.0, %v1028
    %v1030 = vpop.f32.mrf.mxu0
    %v1031 = vadd.f32 0.0, %v1030
    %v1032 = vpop.f32.mrf.mxu0
    %v1033 = vadd.f32 0.0, %v1032
    %v1034 = vpop.f32.mrf.mxu0
    %v1035 = vadd.f32 0.0, %v1034
    %1036 = vdwg.mxu0
    %1037 = vmatprep.subr.bf16.mxu0 %v821
    %1038 = vmatpush1.bf16.msra.mxu0 %v820
    %1039 = vmatprep.subr.bf16.mxu0 %v817
    %1040 = vmatpush1.bf16.msra.mxu0 %v816
    %1041 = vmatprep.subr.bf16.mxu0 %v813
    %1042 = vmatpush1.bf16.msra.mxu0 %v812
    %1043 = vmatprep.subr.bf16.mxu0 %v809
    %1044 = vmatpush1.bf16.msra.mxu0 %v808
    %1045 = vmatprep.subr.bf16.mxu0 %v805
    %1046 = vmatpush1.bf16.msra.mxu0 %v804
    %1047 = vmatprep.subr.bf16.mxu0 %v801
    %1048 = vmatpush1.bf16.msra.mxu0 %v800
    %1049 = vmatprep.subr.bf16.mxu0 %v797
    %1050 = vmatpush1.bf16.msra.mxu0 %v796
    %1051 = vmatprep.subr.bf16.mxu0 %v793
    %1052 = vmatpush1.bf16.msra.mxu0 %v792
    %1053 = vmatprep.subr.bf16.mxu0 %v853
    %1054 = vmatpush2.bf16.msra.mxu0 %v852
    %1055 = vmatprep.subr.bf16.mxu0 %v849
    %1056 = vmatpush2.bf16.msra.mxu0 %v848
    %1057 = vmatprep.subr.bf16.mxu0 %v845
    %1058 = vmatpush2.bf16.msra.mxu0 %v844
    %1059 = vmatprep.subr.bf16.mxu0 %v841
    %1060 = vmatpush2.bf16.msra.mxu0 %v840
    %1061 = vmatprep.subr.bf16.mxu0 %v837
    %1062 = vmatpush2.bf16.msra.mxu0 %v836
    %1063 = vmatprep.subr.bf16.mxu0 %v833
    %1064 = vmatpush2.bf16.msra.mxu0 %v832
    %1065 = vmatprep.subr.bf16.mxu0 %v829
    %1066 = vmatpush2.bf16.msra.mxu0 %v828
    %1067 = vmatprep.subr.bf16.mxu0 %v825
    %1068 = vmatpush2.bf16.msra.mxu0 %v824
    %1069 = vmatprep.mubr.bf16.mxu0 %v83
    %1070 = vmatmul.mubr.bf16.gmra.mxu0 %v82
    %v1071 = vpop.f32.mrf.mxu0
    %v1072 = vadd.f32 %v1019, %v1071
    %v1073 = vpop.f32.mrf.mxu0
    %v1074 = vadd.f32 %v1021, %v1073
    %v1075 = vpop.f32.mrf.mxu0
    %v1076 = vadd.f32 %v1023, %v1075
    %v1077 = vpop.f32.mrf.mxu0
    %v1078 = vadd.f32 %v1025, %v1077
    %1079 = vmatprep.mubr.bf16.mxu0 %v87
    %1080 = vmatmul.mubr.bf16.gmra.mxu0 %v86
    %v1081 = vpop.f32.mrf.mxu0
    %v1082 = vadd.f32 %v1029, %v1081
    %v1083 = vpop.f32.mrf.mxu0
    %v1084 = vadd.f32 %v1031, %v1083
    %v1085 = vpop.f32.mrf.mxu0
    %v1086 = vadd.f32 %v1033, %v1085
    %v1087 = vpop.f32.mrf.mxu0
    %v1088 = vadd.f32 %v1035, %v1087
    %1089 = vdwg.mxu0
    %1090 = vmatprep.subr.bf16.mxu0 %v759
    %1091 = vmatpush1.bf16.msra.mxu0 %v758
    %1092 = vmatprep.subr.bf16.mxu0 %v755
    %1093 = vmatpush1.bf16.msra.mxu0 %v754
    %1094 = vmatprep.subr.bf16.mxu0 %v751
    %1095 = vmatpush1.bf16.msra.mxu0 %v750
    %1096 = vmatprep.subr.bf16.mxu0 %v747
    %1097 = vmatpush1.bf16.msra.mxu0 %v746
    %1098 = vmatprep.subr.bf16.mxu0 %v743
    %1099 = vmatpush1.bf16.msra.mxu0 %v742
    %1100 = vmatprep.subr.bf16.mxu0 %v739
    %1101 = vmatpush1.bf16.msra.mxu0 %v738
    %1102 = vmatprep.subr.bf16.mxu0 %v735
    %1103 = vmatpush1.bf16.msra.mxu0 %v734
    %1104 = vmatprep.subr.bf16.mxu0 %v731
    %1105 = vmatpush1.bf16.msra.mxu0 %v730
    %1106 = vmatprep.subr.bf16.mxu0 %v791
    %1107 = vmatpush2.bf16.msra.mxu0 %v790
    %1108 = vmatprep.subr.bf16.mxu0 %v787
    %1109 = vmatpush2.bf16.msra.mxu0 %v786
    %1110 = vmatprep.subr.bf16.mxu0 %v783
    %1111 = vmatpush2.bf16.msra.mxu0 %v782
    %1112 = vmatprep.subr.bf16.mxu0 %v779
    %1113 = vmatpush2.bf16.msra.mxu0 %v778
    %1114 = vmatprep.subr.bf16.mxu0 %v775
    %1115 = vmatpush2.bf16.msra.mxu0 %v774
    %1116 = vmatprep.subr.bf16.mxu0 %v771
    %1117 = vmatpush2.bf16.msra.mxu0 %v770
    %1118 = vmatprep.subr.bf16.mxu0 %v767
    %1119 = vmatpush2.bf16.msra.mxu0 %v766
    %1120 = vmatprep.subr.bf16.mxu0 %v763
    %1121 = vmatpush2.bf16.msra.mxu0 %v762
    %1122 = vmatprep.mubr.bf16.mxu0 %v81
    %1123 = vmatmul.mubr.bf16.gmra.mxu0 %v80
    %v1124 = vpop.f32.mrf.mxu0
    %v1125 = vadd.f32 0.0, %v1124
    %v1126 = vpop.f32.mrf.mxu0
    %v1127 = vadd.f32 0.0, %v1126
    %v1128 = vpop.f32.mrf.mxu0
    %v1129 = vadd.f32 0.0, %v1128
    %v1130 = vpop.f32.mrf.mxu0
    %v1131 = vadd.f32 0.0, %v1130
    %1132 = vmatprep.mubr.bf16.mxu0 %v85
    %1133 = vmatmul.mubr.bf16.gmra.mxu0 %v84
    %v1134 = vpop.f32.mrf.mxu0
    %v1135 = vadd.f32 0.0, %v1134
    %v1136 = vpop.f32.mrf.mxu0
    %v1137 = vadd.f32 0.0, %v1136
    %v1138 = vpop.f32.mrf.mxu0
    %v1139 = vadd.f32 0.0, %v1138
    %v1140 = vpop.f32.mrf.mxu0
    %v1141 = vadd.f32 0.0, %v1140
    %1142 = vdwg.mxu0
    %1143 = vmatprep.subr.bf16.mxu0 %v823
    %1144 = vmatpush1.bf16.msra.mxu0 %v822
    %1145 = vmatprep.subr.bf16.mxu0 %v819
    %1146 = vmatpush1.bf16.msra.mxu0 %v818
    %1147 = vmatprep.subr.bf16.mxu0 %v815
    %1148 = vmatpush1.bf16.msra.mxu0 %v814
    %1149 = vmatprep.subr.bf16.mxu0 %v811
    %1150 = vmatpush1.bf16.msra.mxu0 %v810
    %1151 = vmatprep.subr.bf16.mxu0 %v807
    %1152 = vmatpush1.bf16.msra.mxu0 %v806
    %1153 = vmatprep.subr.bf16.mxu0 %v803
    %1154 = vmatpush1.bf16.msra.mxu0 %v802
    %1155 = vmatprep.subr.bf16.mxu0 %v799
    %1156 = vmatpush1.bf16.msra.mxu0 %v798
    %1157 = vmatprep.subr.bf16.mxu0 %v795
    %1158 = vmatpush1.bf16.msra.mxu0 %v794
    %1159 = vmatprep.subr.bf16.mxu0 %v855
    %1160 = vmatpush2.bf16.msra.mxu0 %v854
    %1161 = vmatprep.subr.bf16.mxu0 %v851
    %1162 = vmatpush2.bf16.msra.mxu0 %v850
    %1163 = vmatprep.subr.bf16.mxu0 %v847
    %1164 = vmatpush2.bf16.msra.mxu0 %v846
    %1165 = vmatprep.subr.bf16.mxu0 %v843
    %1166 = vmatpush2.bf16.msra.mxu0 %v842
    %1167 = vmatprep.subr.bf16.mxu0 %v839
    %1168 = vmatpush2.bf16.msra.mxu0 %v838
    %1169 = vmatprep.subr.bf16.mxu0 %v835
    %1170 = vmatpush2.bf16.msra.mxu0 %v834
    %1171 = vmatprep.subr.bf16.mxu0 %v831
    %1172 = vmatpush2.bf16.msra.mxu0 %v830
    %1173 = vmatprep.subr.bf16.mxu0 %v827
    %1174 = vmatpush2.bf16.msra.mxu0 %v826
    %1175 = vmatprep.mubr.bf16.mxu0 %v83
    %1176 = vmatmul.mubr.bf16.gmra.mxu0 %v82
    %v1177 = vpop.f32.mrf.mxu0
    %v1178 = vadd.f32 %v1125, %v1177
    %v1179 = vpop.f32.mrf.mxu0
    %v1180 = vadd.f32 %v1127, %v1179
    %v1181 = vpop.f32.mrf.mxu0
    %v1182 = vadd.f32 %v1129, %v1181
    %v1183 = vpop.f32.mrf.mxu0
    %v1184 = vadd.f32 %v1131, %v1183
    %1185 = vmatprep.mubr.bf16.mxu0 %v87
    %1186 = vmatmul.mubr.bf16.gmra.mxu0 %v86
    %v1187 = vpop.f32.mrf.mxu0
    %v1188 = vadd.f32 %v1135, %v1187
    %v1189 = vpop.f32.mrf.mxu0
    %v1190 = vadd.f32 %v1137, %v1189
    %v1191 = vpop.f32.mrf.mxu0
    %v1192 = vadd.f32 %v1139, %v1191
    %v1193 = vpop.f32.mrf.mxu0
    %v1194 = vadd.f32 %v1141, %v1193
    %1195 = vdwg.mxu0
    %vm1212 = vcmask 1046528
    %v1213 = vrot.slane %v1072, 1
    %v1214 = vrot.slane %v1076, 1
    %v1215 = vsel %vm1212, %v1213, %v1214
    %v1216 = vrot.slane %v1074, 1
    %v1217 = vrot.slane %v1078, 1
    %v1218 = vsel %vm1212, %v1216, %v1217
    %v1219 = vrot.slane %v1178, 1
    %v1220 = vrot.slane %v1182, 1
    %v1221 = vsel %vm1212, %v1219, %v1220
    %v1222 = vrot.slane %v1180, 1
    %v1223 = vrot.slane %v1184, 1
    %v1224 = vsel %vm1212, %v1222, %v1223
    %v1225 = vrot.slane %v1082, 1
    %v1226 = vsel %vm1212, %v1214, %v1225
    %v1227 = vrot.slane %v1084, 1
    %v1228 = vsel %vm1212, %v1217, %v1227
    %v1229 = vrot.slane %v1188, 1
    %v1230 = vsel %vm1212, %v1220, %v1229
    %v1231 = vrot.slane %v1190, 1
    %v1232 = vsel %vm1212, %v1223, %v1231
    %v1233 = vrot.slane %v1086, 1
    %v1234 = vsel %vm1212, %v1225, %v1233
    %v1235 = vrot.slane %v1088, 1
    %v1236 = vsel %vm1212, %v1227, %v1235
    %v1237 = vrot.slane %v1192, 1
    %v1238 = vsel %vm1212, %v1229, %v1237
    %v1239 = vrot.slane %v1194, 1
    %v1240 = vsel %vm1212, %v1231, %v1239
    %v1261 = vsel %vm1212, %v1233, %v1213
    %v1262 = vsel %vm1212, %v1235, %v1216
    %v1263 = vsel %vm1212, %v1237, %v1219
    %v1264 = vsel %vm1212, %v1239, %v1222
    %v1393 = vunpack.c.l.b16 %v88
    %v1394 = vunpack.c.h.b16 %v88
    %v1395 = vunpack.c.l.b16 %v89
    %v1396 = vunpack.c.h.b16 %v89
    %v1397 = vunpack.c.l.b16 %v90
    %v1398 = vunpack.c.h.b16 %v90
    %v1399 = vunpack.c.l.b16 %v91
    %v1400 = vunpack.c.h.b16 %v91
    %v1401 = vunpack.c.l.b16 %v92
    %v1402 = vunpack.c.h.b16 %v92
    %v1403 = vunpack.c.l.b16 %v93
    %v1404 = vunpack.c.h.b16 %v93
    %v1405 = vunpack.c.l.b16 %v94
    %v1406 = vunpack.c.h.b16 %v94
    %v1407 = vunpack.c.l.b16 %v95
    %v1408 = vunpack.c.h.b16 %v95
    %v1409 = vunpack.c.l.b16 %v96
    %v1410 = vunpack.c.h.b16 %v96
    %v1411 = vunpack.c.l.b16 %v97
    %v1412 = vunpack.c.h.b16 %v97
    %v1413 = vunpack.c.l.b16 %v98
    %v1414 = vunpack.c.h.b16 %v98
    %v1415 = vunpack.c.l.b16 %v99
    %v1416 = vunpack.c.h.b16 %v99
    %v1417 = vunpack.c.l.b16 %v100
    %v1418 = vunpack.c.h.b16 %v100
    %v1419 = vunpack.c.l.b16 %v101
    %v1420 = vunpack.c.h.b16 %v101
    %v1421 = vunpack.c.l.b16 %v102
    %v1422 = vunpack.c.h.b16 %v102
    %v1423 = vunpack.c.l.b16 %v103
    %v1424 = vunpack.c.h.b16 %v103
    %v1425 = vunpack.c.l.b16 %v104
    %v1426 = vunpack.c.h.b16 %v104
    %v1427 = vunpack.c.l.b16 %v105
    %v1428 = vunpack.c.h.b16 %v105
    %v1429 = vunpack.c.l.b16 %v106
    %v1430 = vunpack.c.h.b16 %v106
    %v1431 = vunpack.c.l.b16 %v107
    %v1432 = vunpack.c.h.b16 %v107
    %v1433 = vunpack.c.l.b16 %v108
    %v1434 = vunpack.c.h.b16 %v108
    %v1435 = vunpack.c.l.b16 %v109
    %v1436 = vunpack.c.h.b16 %v109
    %v1437 = vunpack.c.l.b16 %v110
    %v1438 = vunpack.c.h.b16 %v110
    %v1439 = vunpack.c.l.b16 %v111
    %v1440 = vunpack.c.h.b16 %v111
    %v1441 = vunpack.c.l.b16 %v112
    %v1442 = vunpack.c.h.b16 %v112
    %v1443 = vunpack.c.l.b16 %v113
    %v1444 = vunpack.c.h.b16 %v113
    %v1445 = vunpack.c.l.b16 %v114
    %v1446 = vunpack.c.h.b16 %v114
    %v1447 = vunpack.c.l.b16 %v115
    %v1448 = vunpack.c.h.b16 %v115
    %v1449 = vunpack.c.l.b16 %v116
    %v1450 = vunpack.c.h.b16 %v116
    %v1451 = vunpack.c.l.b16 %v117
    %v1452 = vunpack.c.h.b16 %v117
    %v1453 = vunpack.c.l.b16 %v118
    %v1454 = vunpack.c.h.b16 %v118
    %v1455 = vunpack.c.l.b16 %v119
    %v1456 = vunpack.c.h.b16 %v119
    %v1457 = vunpack.c.l.b16 %v120
    %v1458 = vunpack.c.h.b16 %v120
    %v1459 = vunpack.c.l.b16 %v121
    %v1460 = vunpack.c.h.b16 %v121
    %v1461 = vunpack.c.l.b16 %v122
    %v1462 = vunpack.c.h.b16 %v122
    %v1463 = vunpack.c.l.b16 %v123
    %v1464 = vunpack.c.h.b16 %v123
    %v1465 = vunpack.c.l.b16 %v124
    %v1466 = vunpack.c.h.b16 %v124
    %v1467 = vunpack.c.l.b16 %v125
    %v1468 = vunpack.c.h.b16 %v125
    %v1469 = vunpack.c.l.b16 %v126
    %v1470 = vunpack.c.h.b16 %v126
    %v1471 = vunpack.c.l.b16 %v127
    %v1472 = vunpack.c.h.b16 %v127
    %v1473 = vunpack.c.l.b16 %v128
    %v1474 = vunpack.c.h.b16 %v128
    %v1475 = vunpack.c.l.b16 %v129
    %v1476 = vunpack.c.h.b16 %v129
    %v1477 = vunpack.c.l.b16 %v130
    %v1478 = vunpack.c.h.b16 %v130
    %v1479 = vunpack.c.l.b16 %v131
    %v1480 = vunpack.c.h.b16 %v131
    %v1481 = vunpack.c.l.b16 %v132
    %v1482 = vunpack.c.h.b16 %v132
    %v1483 = vunpack.c.l.b16 %v133
    %v1484 = vunpack.c.h.b16 %v133
    %v1485 = vunpack.c.l.b16 %v134
    %v1486 = vunpack.c.h.b16 %v134
    %v1487 = vunpack.c.l.b16 %v135
    %v1488 = vunpack.c.h.b16 %v135
    %v1489 = vunpack.c.l.b16 %v136
    %v1490 = vunpack.c.h.b16 %v136
    %v1491 = vunpack.c.l.b16 %v137
    %v1492 = vunpack.c.h.b16 %v137
    %v1493 = vunpack.c.l.b16 %v138
    %v1494 = vunpack.c.h.b16 %v138
    %v1495 = vunpack.c.l.b16 %v139
    %v1496 = vunpack.c.h.b16 %v139
    %v1497 = vunpack.c.l.b16 %v140
    %v1498 = vunpack.c.h.b16 %v140
    %v1499 = vunpack.c.l.b16 %v141
    %v1500 = vunpack.c.h.b16 %v141
    %v1501 = vunpack.c.l.b16 %v142
    %v1502 = vunpack.c.h.b16 %v142
    %v1503 = vunpack.c.l.b16 %v143
    %v1504 = vunpack.c.h.b16 %v143
    %v1505 = vunpack.c.l.b16 %v144
    %v1506 = vunpack.c.h.b16 %v144
    %v1507 = vunpack.c.l.b16 %v145
    %v1508 = vunpack.c.h.b16 %v145
    %v1509 = vunpack.c.l.b16 %v146
    %v1510 = vunpack.c.h.b16 %v146
    %v1511 = vunpack.c.l.b16 %v147
    %v1512 = vunpack.c.h.b16 %v147
    %v1513 = vunpack.c.l.b16 %v148
    %v1514 = vunpack.c.h.b16 %v148
    %v1515 = vunpack.c.l.b16 %v149
    %v1516 = vunpack.c.h.b16 %v149
    %v1517 = vunpack.c.l.b16 %v150
    %v1518 = vunpack.c.h.b16 %v150
    %v1519 = vunpack.c.l.b16 %v151
    %v1520 = vunpack.c.h.b16 %v151
    %v1521 = vunpack.c.l.b16 %v152
    %v1522 = vunpack.c.h.b16 %v152
    %v1523 = vunpack.c.l.b16 %v153
    %v1524 = vunpack.c.h.b16 %v153
    %v1525 = vunpack.c.l.b16 %v154
    %v1526 = vunpack.c.h.b16 %v154
    %v1527 = vunpack.c.l.b16 %v155
    %v1528 = vunpack.c.h.b16 %v155
    %v1529 = vunpack.c.l.b16 %v156
    %v1530 = vunpack.c.h.b16 %v156
    %v1531 = vunpack.c.l.b16 %v157
    %v1532 = vunpack.c.h.b16 %v157
    %v1533 = vunpack.c.l.b16 %v158
    %v1534 = vunpack.c.h.b16 %v158
    %v1535 = vunpack.c.l.b16 %v159
    %v1536 = vunpack.c.h.b16 %v159
    %v1537 = vunpack.c.l.b16 %v160
    %v1538 = vunpack.c.h.b16 %v160
    %v1539 = vunpack.c.l.b16 %v161
    %v1540 = vunpack.c.h.b16 %v161
    %v1541 = vunpack.c.l.b16 %v162
    %v1542 = vunpack.c.h.b16 %v162
    %v1543 = vunpack.c.l.b16 %v163
    %v1544 = vunpack.c.h.b16 %v163
    %v1545 = vunpack.c.l.b16 %v164
    %v1546 = vunpack.c.h.b16 %v164
    %v1547 = vunpack.c.l.b16 %v165
    %v1548 = vunpack.c.h.b16 %v165
    %v1549 = vunpack.c.l.b16 %v166
    %v1550 = vunpack.c.h.b16 %v166
    %v1551 = vunpack.c.l.b16 %v167
    %v1552 = vunpack.c.h.b16 %v167
    %v1553 = vunpack.c.l.b16 %v168
    %v1554 = vunpack.c.h.b16 %v168
    %v1555 = vunpack.c.l.b16 %v169
    %v1556 = vunpack.c.h.b16 %v169
    %v1557 = vunpack.c.l.b16 %v170
    %v1558 = vunpack.c.h.b16 %v170
    %v1559 = vunpack.c.l.b16 %v171
    %v1560 = vunpack.c.h.b16 %v171
    %v1561 = vunpack.c.l.b16 %v172
    %v1562 = vunpack.c.h.b16 %v172
    %v1563 = vunpack.c.l.b16 %v173
    %v1564 = vunpack.c.h.b16 %v173
    %v1565 = vunpack.c.l.b16 %v174
    %v1566 = vunpack.c.h.b16 %v174
    %v1567 = vunpack.c.l.b16 %v175
    %v1568 = vunpack.c.h.b16 %v175
    %v1569 = vunpack.c.l.b16 %v176
    %v1570 = vunpack.c.h.b16 %v176
    %v1571 = vunpack.c.l.b16 %v177
    %v1572 = vunpack.c.h.b16 %v177
    %v1573 = vunpack.c.l.b16 %v178
    %v1574 = vunpack.c.h.b16 %v178
    %v1575 = vunpack.c.l.b16 %v179
    %v1576 = vunpack.c.h.b16 %v179
    %v1577 = vunpack.c.l.b16 %v180
    %v1578 = vunpack.c.h.b16 %v180
    %v1579 = vunpack.c.l.b16 %v181
    %v1580 = vunpack.c.h.b16 %v181
    %v1581 = vunpack.c.l.b16 %v182
    %v1582 = vunpack.c.h.b16 %v182
    %v1583 = vunpack.c.l.b16 %v183
    %v1584 = vunpack.c.h.b16 %v183
    %v1585 = vunpack.c.l.b16 %v184
    %v1586 = vunpack.c.h.b16 %v184
    %v1587 = vunpack.c.l.b16 %v185
    %v1588 = vunpack.c.h.b16 %v185
    %v1589 = vunpack.c.l.b16 %v186
    %v1590 = vunpack.c.h.b16 %v186
    %v1591 = vunpack.c.l.b16 %v187
    %v1592 = vunpack.c.h.b16 %v187
    %v1593 = vunpack.c.l.b16 %v188
    %v1594 = vunpack.c.h.b16 %v188
    %v1595 = vunpack.c.l.b16 %v189
    %v1596 = vunpack.c.h.b16 %v189
    %v1597 = vunpack.c.l.b16 %v190
    %v1598 = vunpack.c.h.b16 %v190
    %v1599 = vunpack.c.l.b16 %v191
    %v1600 = vunpack.c.h.b16 %v191
    %v1601 = vunpack.c.l.b16 %v192
    %v1602 = vunpack.c.h.b16 %v192
    %v1603 = vunpack.c.l.b16 %v193
    %v1604 = vunpack.c.h.b16 %v193
    %v1605 = vunpack.c.l.b16 %v194
    %v1606 = vunpack.c.h.b16 %v194
    %v1607 = vunpack.c.l.b16 %v195
    %v1608 = vunpack.c.h.b16 %v195
    %v1609 = vunpack.c.l.b16 %v196
    %v1610 = vunpack.c.h.b16 %v196
    %v1611 = vunpack.c.l.b16 %v197
    %v1612 = vunpack.c.h.b16 %v197
    %v1613 = vunpack.c.l.b16 %v198
    %v1614 = vunpack.c.h.b16 %v198
    %v1615 = vunpack.c.l.b16 %v199
    %v1616 = vunpack.c.h.b16 %v199
    %v1617 = vunpack.c.l.b16 %v200
    %v1618 = vunpack.c.h.b16 %v200
    %v1619 = vunpack.c.l.b16 %v201
    %v1620 = vunpack.c.h.b16 %v201
    %v1621 = vunpack.c.l.b16 %v202
    %v1622 = vunpack.c.h.b16 %v202
    %v1623 = vunpack.c.l.b16 %v203
    %v1624 = vunpack.c.h.b16 %v203
    %v1625 = vunpack.c.l.b16 %v204
    %v1626 = vunpack.c.h.b16 %v204
    %v1627 = vunpack.c.l.b16 %v205
    %v1628 = vunpack.c.h.b16 %v205
    %v1629 = vunpack.c.l.b16 %v206
    %v1630 = vunpack.c.h.b16 %v206
    %v1631 = vunpack.c.l.b16 %v207
    %v1632 = vunpack.c.h.b16 %v207
    %v1633 = vunpack.c.l.b16 %v208
    %v1634 = vunpack.c.h.b16 %v208
    %v1635 = vunpack.c.l.b16 %v209
    %v1636 = vunpack.c.h.b16 %v209
    %v1637 = vunpack.c.l.b16 %v210
    %v1638 = vunpack.c.h.b16 %v210
    %v1639 = vunpack.c.l.b16 %v211
    %v1640 = vunpack.c.h.b16 %v211
    %v1641 = vunpack.c.l.b16 %v212
    %v1642 = vunpack.c.h.b16 %v212
    %v1643 = vunpack.c.l.b16 %v213
    %v1644 = vunpack.c.h.b16 %v213
    %v1645 = vunpack.c.l.b16 %v214
    %v1646 = vunpack.c.h.b16 %v214
    %v1647 = vunpack.c.l.b16 %v215
    %v1648 = vunpack.c.h.b16 %v215
    %v1649 = vpack.c.b16 %v1397, %v1393
    %v1650 = vpack.c.b16 %v1398, %v1394
    %v1651 = vpack.c.b16 %v1399, %v1395
    %v1652 = vpack.c.b16 %v1400, %v1396
    %v1653 = vpack.c.b16 %v1405, %v1401
    %v1654 = vpack.c.b16 %v1406, %v1402
    %v1655 = vpack.c.b16 %v1407, %v1403
    %v1656 = vpack.c.b16 %v1408, %v1404
    %v1657 = vpack.c.b16 %v1413, %v1409
    %v1658 = vpack.c.b16 %v1414, %v1410
    %v1659 = vpack.c.b16 %v1415, %v1411
    %v1660 = vpack.c.b16 %v1416, %v1412
    %v1661 = vpack.c.b16 %v1421, %v1417
    %v1662 = vpack.c.b16 %v1422, %v1418
    %v1663 = vpack.c.b16 %v1423, %v1419
    %v1664 = vpack.c.b16 %v1424, %v1420
    %v1665 = vpack.c.b16 %v1429, %v1425
    %v1666 = vpack.c.b16 %v1430, %v1426
    %v1667 = vpack.c.b16 %v1431, %v1427
    %v1668 = vpack.c.b16 %v1432, %v1428
    %v1669 = vpack.c.b16 %v1437, %v1433
    %v1670 = vpack.c.b16 %v1438, %v1434
    %v1671 = vpack.c.b16 %v1439, %v1435
    %v1672 = vpack.c.b16 %v1440, %v1436
    %v1673 = vpack.c.b16 %v1445, %v1441
    %v1674 = vpack.c.b16 %v1446, %v1442
    %v1675 = vpack.c.b16 %v1447, %v1443
    %v1676 = vpack.c.b16 %v1448, %v1444
    %v1677 = vpack.c.b16 %v1453, %v1449
    %v1678 = vpack.c.b16 %v1454, %v1450
    %v1679 = vpack.c.b16 %v1455, %v1451
    %v1680 = vpack.c.b16 %v1456, %v1452
    %v1681 = vpack.c.b16 %v1461, %v1457
    %v1682 = vpack.c.b16 %v1462, %v1458
    %v1683 = vpack.c.b16 %v1463, %v1459
    %v1684 = vpack.c.b16 %v1464, %v1460
    %v1685 = vpack.c.b16 %v1469, %v1465
    %v1686 = vpack.c.b16 %v1470, %v1466
    %v1687 = vpack.c.b16 %v1471, %v1467
    %v1688 = vpack.c.b16 %v1472, %v1468
    %v1689 = vpack.c.b16 %v1477, %v1473
    %v1690 = vpack.c.b16 %v1478, %v1474
    %v1691 = vpack.c.b16 %v1479, %v1475
    %v1692 = vpack.c.b16 %v1480, %v1476
    %v1693 = vpack.c.b16 %v1485, %v1481
    %v1694 = vpack.c.b16 %v1486, %v1482
    %v1695 = vpack.c.b16 %v1487, %v1483
    %v1696 = vpack.c.b16 %v1488, %v1484
    %v1697 = vpack.c.b16 %v1493, %v1489
    %v1698 = vpack.c.b16 %v1494, %v1490
    %v1699 = vpack.c.b16 %v1495, %v1491
    %v1700 = vpack.c.b16 %v1496, %v1492
    %v1701 = vpack.c.b16 %v1501, %v1497
    %v1702 = vpack.c.b16 %v1502, %v1498
    %v1703 = vpack.c.b16 %v1503, %v1499
    %v1704 = vpack.c.b16 %v1504, %v1500
    %v1705 = vpack.c.b16 %v1509, %v1505
    %v1706 = vpack.c.b16 %v1510, %v1506
    %v1707 = vpack.c.b16 %v1511, %v1507
    %v1708 = vpack.c.b16 %v1512, %v1508
    %v1709 = vpack.c.b16 %v1517, %v1513
    %v1710 = vpack.c.b16 %v1518, %v1514
    %v1711 = vpack.c.b16 %v1519, %v1515
    %v1712 = vpack.c.b16 %v1520, %v1516
    %v1713 = vpack.c.b16 %v1525, %v1521
    %v1714 = vpack.c.b16 %v1526, %v1522
    %v1715 = vpack.c.b16 %v1527, %v1523
    %v1716 = vpack.c.b16 %v1528, %v1524
    %v1717 = vpack.c.b16 %v1533, %v1529
    %v1718 = vpack.c.b16 %v1534, %v1530
    %v1719 = vpack.c.b16 %v1535, %v1531
    %v1720 = vpack.c.b16 %v1536, %v1532
    %v1721 = vpack.c.b16 %v1541, %v1537
    %v1722 = vpack.c.b16 %v1542, %v1538
    %v1723 = vpack.c.b16 %v1543, %v1539
    %v1724 = vpack.c.b16 %v1544, %v1540
    %v1725 = vpack.c.b16 %v1549, %v1545
    %v1726 = vpack.c.b16 %v1550, %v1546
    %v1727 = vpack.c.b16 %v1551, %v1547
    %v1728 = vpack.c.b16 %v1552, %v1548
    %v1729 = vpack.c.b16 %v1557, %v1553
    %v1730 = vpack.c.b16 %v1558, %v1554
    %v1731 = vpack.c.b16 %v1559, %v1555
    %v1732 = vpack.c.b16 %v1560, %v1556
    %v1733 = vpack.c.b16 %v1565, %v1561
    %v1734 = vpack.c.b16 %v1566, %v1562
    %v1735 = vpack.c.b16 %v1567, %v1563
    %v1736 = vpack.c.b16 %v1568, %v1564
    %v1737 = vpack.c.b16 %v1573, %v1569
    %v1738 = vpack.c.b16 %v1574, %v1570
    %v1739 = vpack.c.b16 %v1575, %v1571
    %v1740 = vpack.c.b16 %v1576, %v1572
    %v1741 = vpack.c.b16 %v1581, %v1577
    %v1742 = vpack.c.b16 %v1582, %v1578
    %v1743 = vpack.c.b16 %v1583, %v1579
    %v1744 = vpack.c.b16 %v1584, %v1580
    %v1745 = vpack.c.b16 %v1589, %v1585
    %v1746 = vpack.c.b16 %v1590, %v1586
    %v1747 = vpack.c.b16 %v1591, %v1587
    %v1748 = vpack.c.b16 %v1592, %v1588
    %v1749 = vpack.c.b16 %v1597, %v1593
    %v1750 = vpack.c.b16 %v1598, %v1594
    %v1751 = vpack.c.b16 %v1599, %v1595
    %v1752 = vpack.c.b16 %v1600, %v1596
    %v1753 = vpack.c.b16 %v1605, %v1601
    %v1754 = vpack.c.b16 %v1606, %v1602
    %v1755 = vpack.c.b16 %v1607, %v1603
    %v1756 = vpack.c.b16 %v1608, %v1604
    %v1757 = vpack.c.b16 %v1613, %v1609
    %v1758 = vpack.c.b16 %v1614, %v1610
    %v1759 = vpack.c.b16 %v1615, %v1611
    %v1760 = vpack.c.b16 %v1616, %v1612
    %v1761 = vpack.c.b16 %v1621, %v1617
    %v1762 = vpack.c.b16 %v1622, %v1618
    %v1763 = vpack.c.b16 %v1623, %v1619
    %v1764 = vpack.c.b16 %v1624, %v1620
    %v1765 = vpack.c.b16 %v1629, %v1625
    %v1766 = vpack.c.b16 %v1630, %v1626
    %v1767 = vpack.c.b16 %v1631, %v1627
    %v1768 = vpack.c.b16 %v1632, %v1628
    %v1769 = vpack.c.b16 %v1637, %v1633
    %v1770 = vpack.c.b16 %v1638, %v1634
    %v1771 = vpack.c.b16 %v1639, %v1635
    %v1772 = vpack.c.b16 %v1640, %v1636
    %v1773 = vpack.c.b16 %v1645, %v1641
    %v1774 = vpack.c.b16 %v1646, %v1642
    %v1775 = vpack.c.b16 %v1647, %v1643
    %v1776 = vpack.c.b16 %v1648, %v1644
    %1905 = vmatprep.subr.bf16.mxu0 %v1678
    %1906 = vmatpush1.bf16.msra.mxu0 %v1677
    %1907 = vmatprep.subr.bf16.mxu0 %v1674
    %1908 = vmatpush1.bf16.msra.mxu0 %v1673
    %1909 = vmatprep.subr.bf16.mxu0 %v1670
    %1910 = vmatpush1.bf16.msra.mxu0 %v1669
    %1911 = vmatprep.subr.bf16.mxu0 %v1666
    %1912 = vmatpush1.bf16.msra.mxu0 %v1665
    %1913 = vmatprep.subr.bf16.mxu0 %v1662
    %1914 = vmatpush1.bf16.msra.mxu0 %v1661
    %1915 = vmatprep.subr.bf16.mxu0 %v1658
    %1916 = vmatpush1.bf16.msra.mxu0 %v1657
    %1917 = vmatprep.subr.bf16.mxu0 %v1654
    %1918 = vmatpush1.bf16.msra.mxu0 %v1653
    %1919 = vmatprep.subr.bf16.mxu0 %v1650
    %1920 = vmatpush1.bf16.msra.mxu0 %v1649
    %1921 = vmatprep.subr.bf16.mxu0 %v1710
    %1922 = vmatpush2.bf16.msra.mxu0 %v1709
    %1923 = vmatprep.subr.bf16.mxu0 %v1706
    %1924 = vmatpush2.bf16.msra.mxu0 %v1705
    %1925 = vmatprep.subr.bf16.mxu0 %v1702
    %1926 = vmatpush2.bf16.msra.mxu0 %v1701
    %1927 = vmatprep.subr.bf16.mxu0 %v1698
    %1928 = vmatpush2.bf16.msra.mxu0 %v1697
    %1929 = vmatprep.subr.bf16.mxu0 %v1694
    %1930 = vmatpush2.bf16.msra.mxu0 %v1693
    %1931 = vmatprep.subr.bf16.mxu0 %v1690
    %1932 = vmatpush2.bf16.msra.mxu0 %v1689
    %1933 = vmatprep.subr.bf16.mxu0 %v1686
    %1934 = vmatpush2.bf16.msra.mxu0 %v1685
    %1935 = vmatprep.subr.bf16.mxu0 %v1682
    %1936 = vmatpush2.bf16.msra.mxu0 %v1681
    %1937 = vmatprep.mubr.bf16.mxu0 %v81
    %1938 = vmatmul.mubr.bf16.gmra.mxu0 %v80
    %v1939 = vpop.f32.mrf.mxu0
    %v1940 = vadd.f32 %v1215, %v1939
    %v1941 = vpop.f32.mrf.mxu0
    %v1942 = vadd.f32 %v1218, %v1941
    %v1943 = vpop.f32.mrf.mxu0
    %v1944 = vadd.f32 %v1226, %v1943
    %v1945 = vpop.f32.mrf.mxu0
    %v1946 = vadd.f32 %v1228, %v1945
    %1947 = vmatprep.mubr.bf16.mxu0 %v85
    %1948 = vmatmul.mubr.bf16.gmra.mxu0 %v84
    %v1949 = vpop.f32.mrf.mxu0
    %v1950 = vadd.f32 %v1234, %v1949
    %v1951 = vpop.f32.mrf.mxu0
    %v1952 = vadd.f32 %v1236, %v1951
    %v1953 = vpop.f32.mrf.mxu0
    %v1954 = vadd.f32 %v1261, %v1953
    %v1955 = vpop.f32.mrf.mxu0
    %v1956 = vadd.f32 %v1262, %v1955
    %1957 = vdwg.mxu0
    %1958 = vmatprep.subr.bf16.mxu0 %v1742
    %1959 = vmatpush1.bf16.msra.mxu0 %v1741
    %1960 = vmatprep.subr.bf16.mxu0 %v1738
    %1961 = vmatpush1.bf16.msra.mxu0 %v1737
    %1962 = vmatprep.subr.bf16.mxu0 %v1734
    %1963 = vmatpush1.bf16.msra.mxu0 %v1733
    %1964 = vmatprep.subr.bf16.mxu0 %v1730
    %1965 = vmatpush1.bf16.msra.mxu0 %v1729
    %1966 = vmatprep.subr.bf16.mxu0 %v1726
    %1967 = vmatpush1.bf16.msra.mxu0 %v1725
    %1968 = vmatprep.subr.bf16.mxu0 %v1722
    %1969 = vmatpush1.bf16.msra.mxu0 %v1721
    %1970 = vmatprep.subr.bf16.mxu0 %v1718
    %1971 = vmatpush1.bf16.msra.mxu0 %v1717
    %1972 = vmatprep.subr.bf16.mxu0 %v1714
    %1973 = vmatpush1.bf16.msra.mxu0 %v1713
    %1974 = vmatprep.subr.bf16.mxu0 %v1774
    %1975 = vmatpush2.bf16.msra.mxu0 %v1773
    %1976 = vmatprep.subr.bf16.mxu0 %v1770
    %1977 = vmatpush2.bf16.msra.mxu0 %v1769
    %1978 = vmatprep.subr.bf16.mxu0 %v1766
    %1979 = vmatpush2.bf16.msra.mxu0 %v1765
    %1980 = vmatprep.subr.bf16.mxu0 %v1762
    %1981 = vmatpush2.bf16.msra.mxu0 %v1761
    %1982 = vmatprep.subr.bf16.mxu0 %v1758
    %1983 = vmatpush2.bf16.msra.mxu0 %v1757
    %1984 = vmatprep.subr.bf16.mxu0 %v1754
    %1985 = vmatpush2.bf16.msra.mxu0 %v1753
    %1986 = vmatprep.subr.bf16.mxu0 %v1750
    %1987 = vmatpush2.bf16.msra.mxu0 %v1749
    %1988 = vmatprep.subr.bf16.mxu0 %v1746
    %1989 = vmatpush2.bf16.msra.mxu0 %v1745
    %1990 = vmatprep.mubr.bf16.mxu0 %v83
    %1991 = vmatmul.mubr.bf16.gmra.mxu0 %v82
    %v1992 = vpop.f32.mrf.mxu0
    %v1993 = vadd.f32 %v1940, %v1992
    %v1994 = vpop.f32.mrf.mxu0
    %v1995 = vadd.f32 %v1942, %v1994
    %v1996 = vpop.f32.mrf.mxu0
    %v1997 = vadd.f32 %v1944, %v1996
    %v1998 = vpop.f32.mrf.mxu0
    %v1999 = vadd.f32 %v1946, %v1998
    %2000 = vmatprep.mubr.bf16.mxu0 %v87
    %2001 = vmatmul.mubr.bf16.gmra.mxu0 %v86
    %v2002 = vpop.f32.mrf.mxu0
    %v2003 = vadd.f32 %v1950, %v2002
    %v2004 = vpop.f32.mrf.mxu0
    %v2005 = vadd.f32 %v1952, %v2004
    %v2006 = vpop.f32.mrf.mxu0
    %v2007 = vadd.f32 %v1954, %v2006
    %v2008 = vpop.f32.mrf.mxu0
    %v2009 = vadd.f32 %v1956, %v2008
    %2010 = vdwg.mxu0
    %2011 = vmatprep.subr.bf16.mxu0 %v1680
    %2012 = vmatpush1.bf16.msra.mxu0 %v1679
    %2013 = vmatprep.subr.bf16.mxu0 %v1676
    %2014 = vmatpush1.bf16.msra.mxu0 %v1675
    %2015 = vmatprep.subr.bf16.mxu0 %v1672
    %2016 = vmatpush1.bf16.msra.mxu0 %v1671
    %2017 = vmatprep.subr.bf16.mxu0 %v1668
    %2018 = vmatpush1.bf16.msra.mxu0 %v1667
    %2019 = vmatprep.subr.bf16.mxu0 %v1664
    %2020 = vmatpush1.bf16.msra.mxu0 %v1663
    %2021 = vmatprep.subr.bf16.mxu0 %v1660
    %2022 = vmatpush1.bf16.msra.mxu0 %v1659
    %2023 = vmatprep.subr.bf16.mxu0 %v1656
    %2024 = vmatpush1.bf16.msra.mxu0 %v1655
    %2025 = vmatprep.subr.bf16.mxu0 %v1652
    %2026 = vmatpush1.bf16.msra.mxu0 %v1651
    %2027 = vmatprep.subr.bf16.mxu0 %v1712
    %2028 = vmatpush2.bf16.msra.mxu0 %v1711
    %2029 = vmatprep.subr.bf16.mxu0 %v1708
    %2030 = vmatpush2.bf16.msra.mxu0 %v1707
    %2031 = vmatprep.subr.bf16.mxu0 %v1704
    %2032 = vmatpush2.bf16.msra.mxu0 %v1703
    %2033 = vmatprep.subr.bf16.mxu0 %v1700
    %2034 = vmatpush2.bf16.msra.mxu0 %v1699
    %2035 = vmatprep.subr.bf16.mxu0 %v1696
    %2036 = vmatpush2.bf16.msra.mxu0 %v1695
    %2037 = vmatprep.subr.bf16.mxu0 %v1692
    %2038 = vmatpush2.bf16.msra.mxu0 %v1691
    %2039 = vmatprep.subr.bf16.mxu0 %v1688
    %2040 = vmatpush2.bf16.msra.mxu0 %v1687
    %2041 = vmatprep.subr.bf16.mxu0 %v1684
    %2042 = vmatpush2.bf16.msra.mxu0 %v1683
    %2043 = vmatprep.mubr.bf16.mxu0 %v81
    %2044 = vmatmul.mubr.bf16.gmra.mxu0 %v80
    %v2045 = vpop.f32.mrf.mxu0
    %v2046 = vadd.f32 %v1221, %v2045
    %v2047 = vpop.f32.mrf.mxu0
    %v2048 = vadd.f32 %v1224, %v2047
    %v2049 = vpop.f32.mrf.mxu0
    %v2050 = vadd.f32 %v1230, %v2049
    %v2051 = vpop.f32.mrf.mxu0
    %v2052 = vadd.f32 %v1232, %v2051
    %2053 = vmatprep.mubr.bf16.mxu0 %v85
    %2054 = vmatmul.mubr.bf16.gmra.mxu0 %v84
    %v2055 = vpop.f32.mrf.mxu0
    %v2056 = vadd.f32 %v1238, %v2055
    %v2057 = vpop.f32.mrf.mxu0
    %v2058 = vadd.f32 %v1240, %v2057
    %v2059 = vpop.f32.mrf.mxu0
    %v2060 = vadd.f32 %v1263, %v2059
    %v2061 = vpop.f32.mrf.mxu0
    %v2062 = vadd.f32 %v1264, %v2061
    %2063 = vdwg.mxu0
    %2064 = vmatprep.subr.bf16.mxu0 %v1744
    %2065 = vmatpush1.bf16.msra.mxu0 %v1743
    %2066 = vmatprep.subr.bf16.mxu0 %v1740
    %2067 = vmatpush1.bf16.msra.mxu0 %v1739
    %2068 = vmatprep.subr.bf16.mxu0 %v1736
    %2069 = vmatpush1.bf16.msra.mxu0 %v1735
    %2070 = vmatprep.subr.bf16.mxu0 %v1732
    %2071 = vmatpush1.bf16.msra.mxu0 %v1731
    %2072 = vmatprep.subr.bf16.mxu0 %v1728
    %2073 = vmatpush1.bf16.msra.mxu0 %v1727
    %2074 = vmatprep.subr.bf16.mxu0 %v1724
    %2075 = vmatpush1.bf16.msra.mxu0 %v1723
    %2076 = vmatprep.subr.bf16.mxu0 %v1720
    %2077 = vmatpush1.bf16.msra.mxu0 %v1719
    %2078 = vmatprep.subr.bf16.mxu0 %v1716
    %2079 = vmatpush1.bf16.msra.mxu0 %v1715
    %2080 = vmatprep.subr.bf16.mxu0 %v1776
    %2081 = vmatpush2.bf16.msra.mxu0 %v1775
    %2082 = vmatprep.subr.bf16.mxu0 %v1772
    %2083 = vmatpush2.bf16.msra.mxu0 %v1771
    %2084 = vmatprep.subr.bf16.mxu0 %v1768
    %2085 = vmatpush2.bf16.msra.mxu0 %v1767
    %2086 = vmatprep.subr.bf16.mxu0 %v1764
    %2087 = vmatpush2.bf16.msra.mxu0 %v1763
    %2088 = vmatprep.subr.bf16.mxu0 %v1760
    %2089 = vmatpush2.bf16.msra.mxu0 %v1759
    %2090 = vmatprep.subr.bf16.mxu0 %v1756
    %2091 = vmatpush2.bf16.msra.mxu0 %v1755
    %2092 = vmatprep.subr.bf16.mxu0 %v1752
    %2093 = vmatpush2.bf16.msra.mxu0 %v1751
    %2094 = vmatprep.subr.bf16.mxu0 %v1748
    %2095 = vmatpush2.bf16.msra.mxu0 %v1747
    %2096 = vmatprep.mubr.bf16.mxu0 %v83
    %2097 = vmatmul.mubr.bf16.gmra.mxu0 %v82
    %v2098 = vpop.f32.mrf.mxu0
    %v2099 = vadd.f32 %v2046, %v2098
    %v2100 = vpop.f32.mrf.mxu0
    %v2101 = vadd.f32 %v2048, %v2100
    %v2102 = vpop.f32.mrf.mxu0
    %v2103 = vadd.f32 %v2050, %v2102
    %v2104 = vpop.f32.mrf.mxu0
    %v2105 = vadd.f32 %v2052, %v2104
    %2106 = vmatprep.mubr.bf16.mxu0 %v87
    %2107 = vmatmul.mubr.bf16.gmra.mxu0 %v86
    %v2108 = vpop.f32.mrf.mxu0
    %v2109 = vadd.f32 %v2056, %v2108
    %v2110 = vpop.f32.mrf.mxu0
    %v2111 = vadd.f32 %v2058, %v2110
    %v2112 = vpop.f32.mrf.mxu0
    %v2113 = vadd.f32 %v2060, %v2112
    %v2114 = vpop.f32.mrf.mxu0
    %v2115 = vadd.f32 %v2062, %v2114
    %2116 = vdwg.mxu0
    %2117 = vst [vmem:[%s3] sm:$0xff] %v1993
    %2118 = vst [vmem:[%s3 + $0x8] sm:$0xff] %v1995
    %2119 = vst [vmem:[%s3 + $0x10] sm:$0xff] %v2099
    %2120 = vst [vmem:[%s3 + $0x18] sm:$0xff] %v2101
    %2121 = vst [vmem:[%s3 + $0x20] sm:$0xff] %v1997
    %2122 = vst [vmem:[%s3 + $0x28] sm:$0xff] %v1999
    %2123 = vst [vmem:[%s3 + $0x30] sm:$0xff] %v2103
    %2124 = vst [vmem:[%s3 + $0x38] sm:$0xff] %v2105
    %2125 = vst [vmem:[%s3 + $0x40] sm:$0xff] %v2003
    %2126 = vst [vmem:[%s3 + $0x48] sm:$0xff] %v2005
    %2127 = vst [vmem:[%s3 + $0x50] sm:$0xff] %v2109
    %2128 = vst [vmem:[%s3 + $0x58] sm:$0xff] %v2111
    %2129 = vst [vmem:[%s3 + $0x60] sm:$0xff] %v2007
    %2130 = vst [vmem:[%s3 + $0x68] sm:$0xff] %v2009
    %2131 = vst [vmem:[%s3 + $0x70] sm:$0xff] %v2113
    %2132 = vst [vmem:[%s3 + $0x78] sm:$0xff] %v2115
    // Predicated region
    $region26: #{_lambda_.1} parent=1 // pred_check
      _
    $region27: #{_lambda_.1} parent=1 // pred_check_branch
      %2134 = sbr.rel (0) target = $region29
    $region28: #{_lambda_.1} parent=1 // pred_region
      _
    $region29: #{_lambda_.1} parent=1 // pred_fallthru
      _
    // Predicated region
    $region30: #{_lambda_.1} parent=1 // pred_check
      _
    $region31: #{_lambda_.1} parent=1 // pred_check_branch
      %2136 = sbr.rel (0) target = $region33
    $region32: #{_lambda_.1} parent=1 // pred_region
      _
    $region33: #{_lambda_.1} parent=1 // pred_fallthru
      _
    %2137 = vsyncpa [#allocation3], 1
    %2138 = vsyncpa [#allocation5], 1

</llo_original>
